<compile_context>
chip_gen: v7x
topology: tpu7x:2x2x1
jax: 0.10.0
libtpu: 0.0.40
codegen_flags: <defaults>
</compile_context>

<pallas_src>
import math

import jax
import jax.numpy as jnp
from jax import lax
from jax.experimental import pallas as pl
from jax.experimental.pallas import tpu as pltpu

MS_HIDDEN = 16  # ms_hidden_dim in the PyTorch module


def _sigmoid(x):
    return 1.0 / (1.0 + jnp.exp(-x))


def gat_solution_kernel(node_ref, hold_ref, solc_ref, nxtc_ref, solr_ref,
                        edge_ref, invc_ref,
                        wq_ref, wk_ref, w1dp_ref, w1e_ref, b1_ref, w2n_ref,
                        c_ref, wgru_ref, bgru_ref,
                        elu_ref, new_ref,
                        xcat_ref):
    """One batch-block per grid step; all solutions fused into stacked matmuls."""
    node = node_ref[...]            # (G, D), G = Bt*gs (batch-block flattened)
    h_old = hold_ref[...]           # (G, D)
    G, D = node.shape
    M = solc_ref.shape[0]           # Bt*ns*seq stacked (sample, solution, step) rows

    # one-hot gather matrices built on the VPU from batch-local joint indices
    lane_idx = lax.broadcasted_iota(jnp.int32, (M, G), 1)
    s_oh = jnp.where(lane_idx == solc_ref[...], 1.0, 0.0)     # (M, G): tour node
    n_oh = jnp.where(lane_idx == nxtc_ref[...], 1.0, 0.0)     # (M, G): successor
    # transposed scatter matrix built directly from the row-form indices
    row_idx = lax.broadcasted_iota(jnp.int32, (G, M), 0)
    s_oh_t = jnp.where(row_idx == solr_ref[0], 1.0, 0.0)      # (G, M)

    # gather all tour / successor embeddings at once, then Wq / Wk projections
    emb_s = jnp.dot(s_oh, node, preferred_element_type=jnp.float32)   # (M, D)
    emb_n = jnp.dot(n_oh, node, preferred_element_type=jnp.float32)
    q = jnp.dot(emb_s, wq_ref[...], preferred_element_type=jnp.float32)
    k = jnp.dot(emb_n, wk_ref[...], preferred_element_type=jnp.float32)
    qk = q * k                                                         # (M, D)

    # packed per-head mixing MLP (2 -> 16 -> 1) + norm_head combine, lane-dense
    ms1 = jnp.dot(qk, w1dp_ref[...], preferred_element_type=jnp.float32)
    ms1 = jnp.maximum(ms1 + edge_ref[...] * w1e_ref[...] + b1_ref[...], 0.0)
    e = jnp.sum(ms1 * w2n_ref[...], axis=-1, keepdims=True) + c_ref[...]   # (M, 1)
    cost = e * invc_ref[...]                                               # (M, 1)

    # scatter-add into the block-diagonal (G, G) attention map (one (gs, gs)
    # block per sample; cross-sample entries stay exactly zero)
    att = jnp.dot(s_oh_t, n_oh * cost, preferred_element_type=jnp.float32)

    neg = jnp.float32(-9.0e15)
    att = jnp.where(att != 0.0, att, neg)
    r_id = lax.broadcasted_iota(jnp.int32, (G, G), 0)
    c_id = lax.broadcasted_iota(jnp.int32, (G, G), 1)
    att = jnp.where(r_id == c_id, neg, att)
    att = att - jnp.max(att, axis=-1, keepdims=True)
    p = jnp.exp(att)
    att = p / jnp.sum(p, axis=-1, keepdims=True)   # cross-sample cols underflow to 0

    sol_emb = jnp.dot(att, node, preferred_element_type=jnp.float32)       # (G, D)

    # fused GRUCell: one (G, 2D) x (2D, 4D) matmul -> [r_pre, z_pre, gi_n, gh_n]
    xcat_ref[:, :D] = sol_emb
    xcat_ref[:, D:] = h_old
    gates = jnp.dot(xcat_ref[...], wgru_ref[...],
                    preferred_element_type=jnp.float32) + bgru_ref[...]
    r = _sigmoid(gates[:, :D])
    z = _sigmoid(gates[:, D:2 * D])
    n = jnp.tanh(gates[:, 2 * D:3 * D] + r * gates[:, 3 * D:])
    h_new = (1.0 - z) * n + z * h_old

    new_ref[...] = h_new.astype(new_ref.dtype)
    elu_ref[...] = jnp.where(h_new > 0.0, h_new,
                             jnp.exp(jnp.minimum(h_new, 0.0)) - 1.0).astype(elu_ref.dtype)


def gat_solution_forward(node_embed, solutions, costs, dist, solution_embed_old,
                         packed, block_batch=None):
    """Wrapper: batch-blocks, pre-gathers edge costs / 1/costs, calls the kernel."""
    bs, gs, D = node_embed.shape
    ns, _, seq = solutions.shape
    (wq_t, wk_t, w1_dp, w1_edge, b1p, w2n, cpack, w_gru, b_gru) = packed

    if block_batch is None:
        block_batch = 1
        for cand in (16, 8, 4, 2, 1):      # biggest block keeping >=2 grid steps (v7x)
            if bs % cand == 0 and bs // cand >= 2:
                block_batch = cand
                break
    bt = block_batch
    assert bs % bt == 0, "block_batch must divide the batch size"
    nblk = bs // bt
    mb = bt * ns * seq                     # stacked rows per grid step
    gb = bt * gs
    # TODO(synk): pad ragged row counts with zero inv-cost rows instead of asserting.
    assert mb % 8 == 0 and gb % 8 == 0, "block row counts must be sublane-aligned"

    solutions = solutions.astype(jnp.int32)
    nxt = jnp.concatenate([solutions[:, :, 1:], solutions[:, :, :1]], axis=-1)

    # wrapper-side gathers (cheap XLA gathers): edge costs and inverse tour costs
    b_idx = jnp.arange(bs)[None, :, None]
    edge = dist[b_idx, solutions, nxt]                           # (ns, bs, seq)
    inv_cost = jnp.broadcast_to((1.0 / costs)[:, :, None], (ns, bs, seq))

    # batch-local joint row index (b % bt)*gs + node, for the flattened block
    local_off = ((jnp.arange(bs, dtype=jnp.int32) % bt) * gs)[None, :, None]

    def to_col(x, dtype):
        # (ns, bs, seq) -> (bs*ns*seq, 1); rows ordered (batch, solution, step)
        return jnp.transpose(x, (1, 0, 2)).reshape(bs * ns * seq, 1).astype(dtype)

    sol_col = to_col(solutions + local_off, jnp.int32)
    nxt_col = to_col(nxt + local_off, jnp.int32)
    edge_col = to_col(edge, jnp.float32)
    invc_col = to_col(inv_cost, jnp.float32)
    sol_row = sol_col.reshape(nblk, 1, mb)                       # row form for S^T

    node_flat = node_embed.reshape(bs * gs, D).astype(jnp.float32)
    hold_flat = solution_embed_old.reshape(bs * gs, D).astype(jnp.float32)

    def blk(shape):
        return pl.BlockSpec(shape, lambda b: (b,) + (0,) * (len(shape) - 1))

    def resident(arr):
        return pl.BlockSpec(arr.shape, lambda b: (0,) * arr.ndim)

    weights = (wq_t, wk_t, w1_dp, w1_edge, b1p, w2n, cpack, w_gru, b_gru)

    in_specs = ([blk((gb, D)),        # node_flat
                 blk((gb, D)),        # solution_embed_old
                 blk((mb, 1)),        # sol (column, batch-local joint index)
                 blk((mb, 1)),        # nxt (column)
                 blk((1, 1, mb)),     # sol (row form)
                 blk((mb, 1)),        # edge cost dist[sol, nxt]
                 blk((mb, 1))]        # 1 / tour cost
                + [resident(w) for w in weights])
    out_specs = [blk((gb, D)), blk((gb, D))]
    out_shape = (jax.ShapeDtypeStruct((bs * gs, D), jnp.float32),
                 jax.ShapeDtypeStruct((bs * gs, D), jnp.float32))

    elu_out, new_out = pl.pallas_call(
        gat_solution_kernel,
        out_shape=out_shape,
        grid_spec=pltpu.PrefetchScalarGridSpec(
            num_scalar_prefetch=0,
            grid=(nblk,),
            in_specs=in_specs,
            out_specs=out_specs,
            scratch_shapes=[pltpu.VMEM((gb, 2 * D), jnp.float32)],
        ),
        compiler_params=pltpu.CompilerParams(
            dimension_semantics=("parallel",)),
    )(node_flat, hold_flat, sol_col, nxt_col, sol_row, edge_col, invc_col, *weights)

    return elu_out.reshape(bs, gs, D), new_out.reshape(bs, gs, D)


def init_gat_solution_params(key, embed_dim, n_heads):
    """Deterministic synthetic parameters mirroring the module's shapes."""
    D, H, M = embed_dim, n_heads, MS_HIDDEN
    mix1_init = (1.0 / 2.0) ** 0.5
    mix2_init = (1.0 / 16.0) ** 0.5
    ks = jax.random.split(key, 11)

    def u(k, shape, lim):
        return jax.random.uniform(k, shape, jnp.float32, -lim, lim)

    lim_d = 1.0 / math.sqrt(D)
    return dict(
        wq=u(ks[0], (D, D), lim_d),                   # Linear(D, D, bias=False).weight
        wk=u(ks[1], (D, D), lim_d),
        mix1_w=u(ks[2], (H, 2, M), mix1_init),
        mix1_b=u(ks[3], (H, M), mix1_init),
        mix2_w=u(ks[4], (H, M, 1), mix2_init),
        mix2_b=u(ks[5], (H, 1), mix2_init),
        norm_w=u(ks[6], (1, H), 1.0 / math.sqrt(H)),  # norm_head.weight
        w_ih=u(ks[7], (3 * D, D), lim_d),             # GRUCell weights / biases
        w_hh=u(ks[8], (3 * D, D), lim_d),
        b_ih=u(ks[9], (3 * D,), lim_d),
        b_hh=u(ks[10], (3 * D,), lim_d),
    )


def pack_params(raw, embed_dim, n_heads):
    """Repack module params into the lane-dense layouts the kernel consumes."""
    D, H, M = embed_dim, n_heads, MS_HIDDEN
    kd = D // H
    scale = (1.0 / math.sqrt(kd)) / math.sqrt(kd)     # norm_factor / sqrt_qkv_dim

    wq_t = raw['wq'].T                                # (D, D): y = x @ W.T
    wk_t = raw['wk'].T

    # head-block-diagonal packing of the per-head mixing MLP
    grp = (jnp.arange(D)[:, None] // kd == jnp.arange(H)[None, :]).astype(jnp.float32)
    w1_dp = (grp[:, :, None] * (scale * raw['mix1_w'][:, 0, :])[None, :, :]).reshape(D, H * M)
    w1_edge = raw['mix1_w'][:, 1, :].reshape(1, H * M)
    b1p = raw['mix1_b'].reshape(1, H * M)
    nw = raw['norm_w'][0]                             # (H,)
    w2n = (raw['mix2_w'][:, :, 0] * nw[:, None]).reshape(1, H * M)
    cpack = jnp.sum(raw['mix2_b'][:, 0] * nw).reshape(1, 1)

    # fused GRU: [x | h] @ W -> [r_pre, z_pre, gi_n, gh_n]
    wih_t = raw['w_ih'].T                             # (D, 3D)
    whh_t = raw['w_hh'].T
    w_gru = jnp.zeros((2 * D, 4 * D), jnp.float32)
    w_gru = w_gru.at[:D, :2 * D].set(wih_t[:, :2 * D])
    w_gru = w_gru.at[D:, :2 * D].set(whh_t[:, :2 * D])
    w_gru = w_gru.at[:D, 2 * D:3 * D].set(wih_t[:, 2 * D:])
    w_gru = w_gru.at[D:, 3 * D:].set(whh_t[:, 2 * D:])
    b_gru = jnp.concatenate([raw['b_ih'][:2 * D] + raw['b_hh'][:2 * D],
                             raw['b_ih'][2 * D:], raw['b_hh'][2 * D:]]).reshape(1, 4 * D)

    return (wq_t, wk_t, w1_dp, w1_edge, b1p, w2n, cpack, w_gru, b_gru)


def gat_solution_reference(node_embed, solutions, costs, dist, h_old, raw, n_heads):
    """Pure-JAX mirror of the PyTorch forward (tsp branch, concat=True)."""
    ns, bs, seq = solutions.shape
    _, gs, D = node_embed.shape
    H = n_heads
    kd = D // H
    norm_factor = 1.0 / math.sqrt(kd)
    sqrt_qkv = math.sqrt(kd)

    nxt = jnp.concatenate([solutions[:, :, 1:], solutions[:, :, :1]], axis=-1)
    b_idx = jnp.arange(bs)[None, :, None]

    emb_solu = node_embed[b_idx, solutions]            # (ns, bs, seq, D)
    emb_next = node_embed[b_idx, nxt]
    q = (emb_solu @ raw['wq'].T).reshape(ns, bs, seq, H, kd).transpose(0, 1, 3, 2, 4)
    k = (emb_next @ raw['wk'].T).reshape(ns, bs, seq, H, kd).transpose(0, 1, 3, 2, 4)
    edge_cost = dist[b_idx, solutions, nxt]            # (ns, bs, seq)

    dp = norm_factor * jnp.sum(q * k, -1)              # (ns, bs, H, seq)
    dp_score = dp / sqrt_qkv
    edge_score = jnp.broadcast_to(edge_cost[:, :, None, :], dp_score.shape)
    two = jnp.stack([dp_score, edge_score], axis=-1)            # (ns,bs,H,seq,2)
    two = jnp.swapaxes(two[:, :, :, :, None, :], 2, 3)          # (ns,bs,seq,H,1,2)
    ms1 = jnp.matmul(two, raw['mix1_w']) + raw['mix1_b'][None, None, :, None, :]
    ms1 = jnp.maximum(ms1, 0.0)
    ms2 = jnp.matmul(ms1, raw['mix2_w']) + raw['mix2_b'][None, None, :, None, :]
    ms2 = jnp.swapaxes(ms2, 2, 3)
    mixed = ms2[..., 0, 0]                                      # (ns,bs,H,seq)
    e = jnp.matmul(jnp.swapaxes(mixed, -1, -2), raw['norm_w'].T)[..., 0]  # (ns,bs,seq)

    cost = e / costs[..., None]

    att = jnp.zeros((bs, gs, gs), jnp.float32)
    bidx_full = jnp.broadcast_to(b_idx, solutions.shape)
    att = att.at[bidx_full, solutions, nxt].add(cost)

    neg = -9.0e15
    att = jnp.where(att != 0.0, att, neg)
    att = jnp.where(jnp.eye(gs, dtype=bool)[None], neg, att)
    att = jax.nn.softmax(att, axis=-1)

    sol_embed = jnp.matmul(att, node_embed)                     # (bs, gs, D)

    x = sol_embed.reshape(bs * gs, D)
    h = h_old.reshape(bs * gs, D)
    gi = x @ raw['w_ih'].T + raw['b_ih']
    gh = h @ raw['w_hh'].T + raw['b_hh']
    r = jax.nn.sigmoid(gi[:, :D] + gh[:, :D])
    z = jax.nn.sigmoid(gi[:, D:2 * D] + gh[:, D:2 * D])
    n = jnp.tanh(gi[:, 2 * D:] + r * gh[:, 2 * D:])
    h_new = ((1.0 - z) * n + z * h).reshape(bs, gs, D)
    elu = jnp.where(h_new > 0.0, h_new, jnp.exp(h_new) - 1.0)
    return elu, h_new


if __name__ == "__main__":
    bs, gs, D, H, ns = 8, 8, 32, 4, 3
    seq = gs                                   # TSP tours over the full graph
    key = jax.random.PRNGKey(0)
    k1, k2, k3, k4, k5, kp = jax.random.split(key, 6)

    node_embed = jax.random.normal(k1, (bs, gs, D), jnp.float32)
    dist = jax.random.uniform(k2, (bs, gs, gs), jnp.float32, 0.1, 2.0)
    costs = jax.random.uniform(k3, (ns, bs), jnp.float32, 1.0, 3.0)
    h_old = jax.random.normal(k4, (bs, gs, D), jnp.float32)

    perm_keys = jax.random.split(k5, ns * bs)
    solutions = jnp.stack([
        jnp.stack([jax.random.permutation(perm_keys[i * bs + b], gs)
                   for b in range(bs)], axis=0)
        for i in range(ns)], axis=0).astype(jnp.int32)        # (ns, bs, seq)

    raw = init_gat_solution_params(kp, D, H)
    packed = pack_params(raw, D, H)

    elu_out, new_out = gat_solution_forward(node_embed, solutions, costs, dist,
                                            h_old, packed, block_batch=4)
    elu_out = jax.block_until_ready(elu_out)
    new_out = jax.block_until_ready(new_out)

    ref_elu, ref_new = gat_solution_reference(node_embed, solutions, costs, dist,
                                              h_old, raw, H)

    assert elu_out.shape == (bs, gs, D) and new_out.shape == (bs, gs, D)
    err_new = float(jnp.max(jnp.abs(new_out - ref_new)))
    err_elu = float(jnp.max(jnp.abs(elu_out - ref_elu)))
    assert err_new < 1e-3 and err_elu < 1e-3, (err_new, err_elu)

    print("KERNEL_OK")
</pallas_src>

<mosaic_0001>
module attributes {stable_mosaic.version = 11 : i64} {
  func.func @gat_solution_kernel(%arg0: i32, %arg1: memref<32x32xf32, #tpu.memory_space<vmem>>, %arg2: memref<32x32xf32, #tpu.memory_space<vmem>>, %arg3: memref<96x1xi32, #tpu.memory_space<vmem>>, %arg4: memref<96x1xi32, #tpu.memory_space<vmem>>, %arg5: memref<1x1x96xi32, #tpu.memory_space<vmem>>, %arg6: memref<96x1xf32, #tpu.memory_space<vmem>>, %arg7: memref<96x1xf32, #tpu.memory_space<vmem>>, %arg8: memref<32x32xf32, #tpu.memory_space<vmem>>, %arg9: memref<32x32xf32, #tpu.memory_space<vmem>>, %arg10: memref<32x64xf32, #tpu.memory_space<vmem>>, %arg11: memref<1x64xf32, #tpu.memory_space<vmem>>, %arg12: memref<1x64xf32, #tpu.memory_space<vmem>>, %arg13: memref<1x64xf32, #tpu.memory_space<vmem>>, %arg14: memref<1x1xf32, #tpu.memory_space<vmem>>, %arg15: memref<64x128xf32, #tpu.memory_space<vmem>>, %arg16: memref<1x128xf32, #tpu.memory_space<vmem>>, %arg17: memref<32x32xf32, #tpu.memory_space<vmem>>, %arg18: memref<32x32xf32, #tpu.memory_space<vmem>>, %arg19: memref<32x64xf32, #tpu.memory_space<vmem>>) attributes {dimension_semantics = [#tpu.dimension_semantics<parallel>], iteration_bounds = array<i64: 2>, scalar_prefetch = 0 : i64, scratch_operands = 1 : i64, tpu.core_type = #tpu.core_type<tc>, window_params = [{transform_indices = @transform_0, window_bounds = array<i64: 32, 32>}, {transform_indices = @transform_1, window_bounds = array<i64: 32, 32>}, {transform_indices = @transform_2, window_bounds = array<i64: 96, 1>}, {transform_indices = @transform_3, window_bounds = array<i64: 96, 1>}, {transform_indices = @transform_4, window_bounds = array<i64: 1, 1, 96>}, {transform_indices = @transform_5, window_bounds = array<i64: 96, 1>}, {transform_indices = @transform_6, window_bounds = array<i64: 96, 1>}, {pipeline_mode = #tpu.pipeline_mode<synchronous>, transform_indices = @transform_7, window_bounds = array<i64: 32, 32>}, {pipeline_mode = #tpu.pipeline_mode<synchronous>, transform_indices = @transform_8, window_bounds = array<i64: 32, 32>}, {pipeline_mode = #tpu.pipeline_mode<synchronous>, transform_indices = @transform_9, window_bounds = array<i64: 32, 64>}, {pipeline_mode = #tpu.pipeline_mode<synchronous>, transform_indices = @transform_10, window_bounds = array<i64: 1, 64>}, {pipeline_mode = #tpu.pipeline_mode<synchronous>, transform_indices = @transform_11, window_bounds = array<i64: 1, 64>}, {pipeline_mode = #tpu.pipeline_mode<synchronous>, transform_indices = @transform_12, window_bounds = array<i64: 1, 64>}, {pipeline_mode = #tpu.pipeline_mode<synchronous>, transform_indices = @transform_13, window_bounds = array<i64: 1, 1>}, {pipeline_mode = #tpu.pipeline_mode<synchronous>, transform_indices = @transform_14, window_bounds = array<i64: 64, 128>}, {pipeline_mode = #tpu.pipeline_mode<synchronous>, transform_indices = @transform_15, window_bounds = array<i64: 1, 128>}, {transform_indices = @transform_16, window_bounds = array<i64: 32, 32>}, {transform_indices = @transform_17, window_bounds = array<i64: 32, 32>}]} {
    %c0 = arith.constant 0 : index
    %c0_0 = arith.constant 0 : index
    %0 = vector.load %arg1[%c0, %c0_0] : memref<32x32xf32, #tpu.memory_space<vmem>>, vector<32x32xf32>
    %c0_1 = arith.constant 0 : index
    %c0_2 = arith.constant 0 : index
    %1 = vector.load %arg2[%c0_1, %c0_2] : memref<32x32xf32, #tpu.memory_space<vmem>>, vector<32x32xf32>
    %2 = tpu.iota {dimensions = array<i32: 1>} : vector<96x32xi32>
    %c0_3 = arith.constant 0 : index
    %c0_4 = arith.constant 0 : index
    %3 = vector.load %arg3[%c0_3, %c0_4] : memref<96x1xi32, #tpu.memory_space<vmem>>, vector<96x1xi32>
    %4 = vector.broadcast %3 : vector<96x1xi32> to vector<96x32xi32>
    %5 = arith.cmpi eq, %2, %4 : vector<96x32xi32>
    %cst = arith.constant 1.000000e+00 : f32
    %cst_5 = arith.constant 0.000000e+00 : f32
    %6 = vector.broadcast %cst : f32 to vector<96x32xf32>
    %7 = vector.broadcast %cst_5 : f32 to vector<96x32xf32>
    %8 = arith.select %5, %6, %7 : vector<96x32xi1>, vector<96x32xf32>
    %c0_6 = arith.constant 0 : index
    %c0_7 = arith.constant 0 : index
    %9 = vector.load %arg4[%c0_6, %c0_7] : memref<96x1xi32, #tpu.memory_space<vmem>>, vector<96x1xi32>
    %10 = vector.broadcast %9 : vector<96x1xi32> to vector<96x32xi32>
    %11 = arith.cmpi eq, %2, %10 : vector<96x32xi32>
    %cst_8 = arith.constant 1.000000e+00 : f32
    %cst_9 = arith.constant 0.000000e+00 : f32
    %12 = vector.broadcast %cst_8 : f32 to vector<96x32xf32>
    %13 = vector.broadcast %cst_9 : f32 to vector<96x32xf32>
    %14 = arith.select %11, %12, %13 : vector<96x32xi1>, vector<96x32xf32>
    %15 = tpu.iota {dimensions = array<i32: 0>} : vector<32x96xi32>
    %c0_10 = arith.constant 0 : index
    %c0_11 = arith.constant 0 : index
    %c0_12 = arith.constant 0 : index
    %16 = vector.load %arg5[%c0_10, %c0_11, %c0_12] : memref<1x1x96xi32, #tpu.memory_space<vmem>>, vector<1x1x96xi32>
    %17 = vector.shape_cast %16 : vector<1x1x96xi32> to vector<1x96xi32>
    %18 = vector.broadcast %17 : vector<1x96xi32> to vector<32x96xi32>
    %19 = arith.cmpi eq, %15, %18 : vector<32x96xi32>
    %cst_13 = arith.constant 1.000000e+00 : f32
    %cst_14 = arith.constant 0.000000e+00 : f32
    %20 = vector.broadcast %cst_13 : f32 to vector<32x96xf32>
    %21 = vector.broadcast %cst_14 : f32 to vector<32x96xf32>
    %22 = arith.select %19, %20, %21 : vector<32x96xi1>, vector<32x96xf32>
    %cst_15 = arith.constant dense<0.000000e+00> : vector<96x32xf32>
    %23 = tpu.matmul %8, %0, %cst_15 {dimension_numbers = #tpu.dot_dimension_numbers<[1], [0], [0], [1], [0, 0, 1, 1], [], []>} : vector<96x32xf32>, vector<32x32xf32>, vector<96x32xf32> -> vector<96x32xf32>
    %cst_16 = arith.constant dense<0.000000e+00> : vector<96x32xf32>
    %24 = tpu.matmul %14, %0, %cst_16 {dimension_numbers = #tpu.dot_dimension_numbers<[1], [0], [0], [1], [0, 0, 1, 1], [], []>} : vector<96x32xf32>, vector<32x32xf32>, vector<96x32xf32> -> vector<96x32xf32>
    %c0_17 = arith.constant 0 : index
    %c0_18 = arith.constant 0 : index
    %25 = vector.load %arg8[%c0_17, %c0_18] : memref<32x32xf32, #tpu.memory_space<vmem>>, vector<32x32xf32>
    %cst_19 = arith.constant dense<0.000000e+00> : vector<96x32xf32>
    %26 = tpu.matmul %23, %25, %cst_19 {dimension_numbers = #tpu.dot_dimension_numbers<[1], [0], [0], [1], [0, 0, 1, 1], [], []>} : vector<96x32xf32>, vector<32x32xf32>, vector<96x32xf32> -> vector<96x32xf32>
    %c0_20 = arith.constant 0 : index
    %c0_21 = arith.constant 0 : index
    %27 = vector.load %arg9[%c0_20, %c0_21] : memref<32x32xf32, #tpu.memory_space<vmem>>, vector<32x32xf32>
    %cst_22 = arith.constant dense<0.000000e+00> : vector<96x32xf32>
    %28 = tpu.matmul %24, %27, %cst_22 {dimension_numbers = #tpu.dot_dimension_numbers<[1], [0], [0], [1], [0, 0, 1, 1], [], []>} : vector<96x32xf32>, vector<32x32xf32>, vector<96x32xf32> -> vector<96x32xf32>
    %29 = arith.mulf %26, %28 : vector<96x32xf32>
    %c0_23 = arith.constant 0 : index
    %c0_24 = arith.constant 0 : index
    %30 = vector.load %arg10[%c0_23, %c0_24] : memref<32x64xf32, #tpu.memory_space<vmem>>, vector<32x64xf32>
    %cst_25 = arith.constant dense<0.000000e+00> : vector<96x64xf32>
    %31 = tpu.matmul %29, %30, %cst_25 {dimension_numbers = #tpu.dot_dimension_numbers<[1], [0], [0], [1], [0, 0, 1, 1], [], []>} : vector<96x32xf32>, vector<32x64xf32>, vector<96x64xf32> -> vector<96x64xf32>
    %c0_26 = arith.constant 0 : index
    %c0_27 = arith.constant 0 : index
    %32 = vector.load %arg6[%c0_26, %c0_27] : memref<96x1xf32, #tpu.memory_space<vmem>>, vector<96x1xf32>
    %c0_28 = arith.constant 0 : index
    %c0_29 = arith.constant 0 : index
    %33 = vector.load %arg11[%c0_28, %c0_29] : memref<1x64xf32, #tpu.memory_space<vmem>>, vector<1x64xf32>
    %34 = vector.broadcast %32 : vector<96x1xf32> to vector<96x64xf32>
    %35 = vector.broadcast %33 : vector<1x64xf32> to vector<96x64xf32>
    %36 = arith.mulf %34, %35 : vector<96x64xf32>
    %37 = arith.addf %31, %36 : vector<96x64xf32>
    %c0_30 = arith.constant 0 : index
    %c0_31 = arith.constant 0 : index
    %38 = vector.load %arg12[%c0_30, %c0_31] : memref<1x64xf32, #tpu.memory_space<vmem>>, vector<1x64xf32>
    %39 = vector.broadcast %38 : vector<1x64xf32> to vector<96x64xf32>
    %40 = arith.addf %37, %39 : vector<96x64xf32>
    %cst_32 = arith.constant 0.000000e+00 : f32
    %41 = vector.broadcast %cst_32 : f32 to vector<96x64xf32>
    %42 = arith.maximumf %40, %41 : vector<96x64xf32>
    %c0_33 = arith.constant 0 : index
    %c0_34 = arith.constant 0 : index
    %43 = vector.load %arg13[%c0_33, %c0_34] : memref<1x64xf32, #tpu.memory_space<vmem>>, vector<1x64xf32>
    %44 = vector.broadcast %43 : vector<1x64xf32> to vector<96x64xf32>
    %45 = arith.mulf %42, %44 : vector<96x64xf32>
    %cst_35 = arith.constant dense<0.000000e+00> : vector<96xf32>
    %46 = vector.multi_reduction <add>, %45, %cst_35 [1] : vector<96x64xf32> to vector<96xf32>
    %47 = vector.shape_cast %46 : vector<96xf32> to vector<96x1xf32>
    %c0_36 = arith.constant 0 : index
    %c0_37 = arith.constant 0 : index
    %48 = vector.load %arg14[%c0_36, %c0_37] : memref<1x1xf32, #tpu.memory_space<vmem>>, vector<1x1xf32>
    %49 = vector.broadcast %48 : vector<1x1xf32> to vector<96x1xf32>
    %50 = arith.addf %47, %49 : vector<96x1xf32>
    %c0_38 = arith.constant 0 : index
    %c0_39 = arith.constant 0 : index
    %51 = vector.load %arg7[%c0_38, %c0_39] : memref<96x1xf32, #tpu.memory_space<vmem>>, vector<96x1xf32>
    %52 = arith.mulf %50, %51 : vector<96x1xf32>
    %53 = vector.broadcast %52 : vector<96x1xf32> to vector<96x32xf32>
    %54 = arith.mulf %14, %53 : vector<96x32xf32>
    %cst_40 = arith.constant dense<0.000000e+00> : vector<32x32xf32>
    %55 = tpu.matmul %22, %54, %cst_40 {dimension_numbers = #tpu.dot_dimension_numbers<[1], [0], [0], [1], [0, 0, 1, 1], [], []>} : vector<32x96xf32>, vector<96x32xf32>, vector<32x32xf32> -> vector<32x32xf32>
    %cst_41 = arith.constant 0.000000e+00 : f32
    %56 = vector.broadcast %cst_41 : f32 to vector<32x32xf32>
    %57 = arith.cmpf one, %55, %56 : vector<32x32xf32>
    %cst_42 = arith.constant -9.000000e+15 : f32
    %58 = vector.broadcast %cst_42 : f32 to vector<32x32xf32>
    %59 = arith.select %57, %55, %58 : vector<32x32xi1>, vector<32x32xf32>
    %60 = tpu.iota {dimensions = array<i32: 0>} : vector<32x32xi32>
    %61 = tpu.iota {dimensions = array<i32: 1>} : vector<32x32xi32>
    %62 = arith.cmpi eq, %60, %61 : vector<32x32xi32>
    %cst_43 = arith.constant -9.000000e+15 : f32
    %63 = vector.broadcast %cst_43 : f32 to vector<32x32xf32>
    %64 = arith.select %62, %63, %59 : vector<32x32xi1>, vector<32x32xf32>
    %cst_44 = arith.constant dense<0xFF800000> : vector<32xf32>
    %65 = vector.multi_reduction <maximumf>, %64, %cst_44 [1] : vector<32x32xf32> to vector<32xf32>
    %66 = vector.shape_cast %65 : vector<32xf32> to vector<32x1xf32>
    %67 = vector.broadcast %66 : vector<32x1xf32> to vector<32x32xf32>
    %68 = arith.subf %64, %67 : vector<32x32xf32>
    %69 = math.exp %68 : vector<32x32xf32>
    %cst_45 = arith.constant dense<0.000000e+00> : vector<32xf32>
    %70 = vector.multi_reduction <add>, %69, %cst_45 [1] : vector<32x32xf32> to vector<32xf32>
    %71 = vector.shape_cast %70 : vector<32xf32> to vector<32x1xf32>
    %72 = vector.broadcast %71 : vector<32x1xf32> to vector<32x32xf32>
    %73 = arith.divf %69, %72 : vector<32x32xf32>
    %cst_46 = arith.constant dense<0.000000e+00> : vector<32x32xf32>
    %74 = tpu.matmul %73, %0, %cst_46 {dimension_numbers = #tpu.dot_dimension_numbers<[1], [0], [0], [1], [0, 0, 1, 1], [], []>} : vector<32x32xf32>, vector<32x32xf32>, vector<32x32xf32> -> vector<32x32xf32>
    %c0_47 = arith.constant 0 : index
    %c0_48 = arith.constant 0 : index
    %75 = vector.load %arg19[%c0_47, %c0_48] : memref<32x64xf32, #tpu.memory_space<vmem>>, vector<32x32xf32>
    tpu.vector_store %arg19[%c0_47, %c0_48], %74 {strides = array<i32>} : memref<32x64xf32, #tpu.memory_space<vmem>>, vector<32x32xf32>,
    %c0_49 = arith.constant 0 : index
    %c32 = arith.constant 32 : index
    %76 = vector.load %arg19[%c0_49, %c32] : memref<32x64xf32, #tpu.memory_space<vmem>>, vector<32x32xf32>
    tpu.vector_store %arg19[%c0_49, %c32], %1 {strides = array<i32>} : memref<32x64xf32, #tpu.memory_space<vmem>>, vector<32x32xf32>,
    %c0_50 = arith.constant 0 : index
    %c0_51 = arith.constant 0 : index
    %77 = vector.load %arg19[%c0_50, %c0_51] : memref<32x64xf32, #tpu.memory_space<vmem>>, vector<32x64xf32>
    %c0_52 = arith.constant 0 : index
    %c0_53 = arith.constant 0 : index
    %78 = vector.load %arg15[%c0_52, %c0_53] : memref<64x128xf32, #tpu.memory_space<vmem>>, vector<64x128xf32>
    %cst_54 = arith.constant dense<0.000000e+00> : vector<32x128xf32>
    %79 = tpu.matmul %77, %78, %cst_54 {dimension_numbers = #tpu.dot_dimension_numbers<[1], [0], [0], [1], [0, 0, 1, 1], [], []>} : vector<32x64xf32>, vector<64x128xf32>, vector<32x128xf32> -> vector<32x128xf32>
    %c0_55 = arith.constant 0 : index
    %c0_56 = arith.constant 0 : index
    %80 = vector.load %arg16[%c0_55, %c0_56] : memref<1x128xf32, #tpu.memory_space<vmem>>, vector<1x128xf32>
    %81 = vector.broadcast %80 : vector<1x128xf32> to vector<32x128xf32>
    %82 = arith.addf %79, %81 : vector<32x128xf32>
    %83 = vector.extract_strided_slice %82 {offsets = [0, 0], sizes = [32, 32], strides = [1, 1]} : vector<32x128xf32> to vector<32x32xf32>
    %cst_57 = arith.constant 0.000000e+00 : f32
    %84 = vector.broadcast %cst_57 : f32 to vector<32x32xf32>
    %85 = arith.subf %84, %83 : vector<32x32xf32>
    %86 = math.exp %85 : vector<32x32xf32>
    %cst_58 = arith.constant 1.000000e+00 : f32
    %87 = vector.broadcast %cst_58 : f32 to vector<32x32xf32>
    %88 = arith.addf %87, %86 : vector<32x32xf32>
    %cst_59 = arith.constant 1.000000e+00 : f32
    %89 = vector.broadcast %cst_59 : f32 to vector<32x32xf32>
    %90 = arith.divf %89, %88 : vector<32x32xf32>
    %91 = vector.extract_strided_slice %82 {offsets = [0, 32], sizes = [32, 32], strides = [1, 1]} : vector<32x128xf32> to vector<32x32xf32>
    %cst_60 = arith.constant 0.000000e+00 : f32
    %92 = vector.broadcast %cst_60 : f32 to vector<32x32xf32>
    %93 = arith.subf %92, %91 : vector<32x32xf32>
    %94 = math.exp %93 : vector<32x32xf32>
    %cst_61 = arith.constant 1.000000e+00 : f32
    %95 = vector.broadcast %cst_61 : f32 to vector<32x32xf32>
    %96 = arith.addf %95, %94 : vector<32x32xf32>
    %cst_62 = arith.constant 1.000000e+00 : f32
    %97 = vector.broadcast %cst_62 : f32 to vector<32x32xf32>
    %98 = arith.divf %97, %96 : vector<32x32xf32>
    %99 = vector.extract_strided_slice %82 {offsets = [0, 64], sizes = [32, 32], strides = [1, 1]} : vector<32x128xf32> to vector<32x32xf32>
    %100 = vector.extract_strided_slice %82 {offsets = [0, 96], sizes = [32, 32], strides = [1, 1]} : vector<32x128xf32> to vector<32x32xf32>
    %101 = arith.mulf %90, %100 : vector<32x32xf32>
    %102 = arith.addf %99, %101 : vector<32x32xf32>
    %103 = math.tanh %102 : vector<32x32xf32>
    %cst_63 = arith.constant 1.000000e+00 : f32
    %104 = vector.broadcast %cst_63 : f32 to vector<32x32xf32>
    %105 = arith.subf %104, %98 : vector<32x32xf32>
    %106 = arith.mulf %105, %103 : vector<32x32xf32>
    %107 = arith.mulf %98, %1 : vector<32x32xf32>
    %108 = arith.addf %106, %107 : vector<32x32xf32>
    %c0_64 = arith.constant 0 : index
    %c0_65 = arith.constant 0 : index
    %109 = vector.load %arg18[%c0_64, %c0_65] : memref<32x32xf32, #tpu.memory_space<vmem>>, vector<32x32xf32>
    tpu.vector_store %arg18[%c0_64, %c0_65], %108 {strides = array<i32>} : memref<32x32xf32, #tpu.memory_space<vmem>>, vector<32x32xf32>,
    %cst_66 = arith.constant 0.000000e+00 : f32
    %110 = vector.broadcast %cst_66 : f32 to vector<32x32xf32>
    %111 = arith.cmpf ogt, %108, %110 : vector<32x32xf32>
    %cst_67 = arith.constant 0.000000e+00 : f32
    %112 = vector.broadcast %cst_67 : f32 to vector<32x32xf32>
    %113 = arith.minimumf %108, %112 : vector<32x32xf32>
    %114 = math.exp %113 : vector<32x32xf32>
    %cst_68 = arith.constant 1.000000e+00 : f32
    %115 = vector.broadcast %cst_68 : f32 to vector<32x32xf32>
    %116 = arith.subf %114, %115 : vector<32x32xf32>
    %117 = arith.select %111, %108, %116 : vector<32x32xi1>, vector<32x32xf32>
    %c0_69 = arith.constant 0 : index
    %c0_70 = arith.constant 0 : index
    %118 = vector.load %arg17[%c0_69, %c0_70] : memref<32x32xf32, #tpu.memory_space<vmem>>, vector<32x32xf32>
    tpu.vector_store %arg17[%c0_69, %c0_70], %117 {strides = array<i32>} : memref<32x32xf32, #tpu.memory_space<vmem>>, vector<32x32xf32>,
    return
  }
  func.func @transform_0(%arg0: i32) -> (i32, i32) {
    %c0_i32 = arith.constant 0 : i32
    %c0_i32_0 = arith.constant 0 : i32
    return %arg0, %c0_i32 : i32, i32
  }
  func.func @transform_1(%arg0: i32) -> (i32, i32) {
    %c0_i32 = arith.constant 0 : i32
    %c0_i32_0 = arith.constant 0 : i32
    return %arg0, %c0_i32 : i32, i32
  }
  func.func @transform_2(%arg0: i32) -> (i32, i32) {
    %c0_i32 = arith.constant 0 : i32
    %c0_i32_0 = arith.constant 0 : i32
    return %arg0, %c0_i32 : i32, i32
  }
  func.func @transform_3(%arg0: i32) -> (i32, i32) {
    %c0_i32 = arith.constant 0 : i32
    %c0_i32_0 = arith.constant 0 : i32
    return %arg0, %c0_i32 : i32, i32
  }
  func.func @transform_4(%arg0: i32) -> (i32, i32, i32) {
    %c0_i32 = arith.constant 0 : i32
    %c0_i32_0 = arith.constant 0 : i32
    %c0_i32_1 = arith.constant 0 : i32
    return %arg0, %c0_i32, %c0_i32_0 : i32, i32, i32
  }
  func.func @transform_5(%arg0: i32) -> (i32, i32) {
    %c0_i32 = arith.constant 0 : i32
    %c0_i32_0 = arith.constant 0 : i32
    return %arg0, %c0_i32 : i32, i32
  }
  func.func @transform_6(%arg0: i32) -> (i32, i32) {
    %c0_i32 = arith.constant 0 : i32
    %c0_i32_0 = arith.constant 0 : i32
    return %arg0, %c0_i32 : i32, i32
  }
  func.func @transform_7(%arg0: i32) -> (i32, i32) {
    %c0_i32 = arith.constant 0 : i32
    %c0_i32_0 = arith.constant 0 : i32
    %c0_i32_1 = arith.constant 0 : i32
    return %c0_i32, %c0_i32_0 : i32, i32
  }
  func.func @transform_8(%arg0: i32) -> (i32, i32) {
    %c0_i32 = arith.constant 0 : i32
    %c0_i32_0 = arith.constant 0 : i32
    %c0_i32_1 = arith.constant 0 : i32
    return %c0_i32, %c0_i32_0 : i32, i32
  }
  func.func @transform_9(%arg0: i32) -> (i32, i32) {
    %c0_i32 = arith.constant 0 : i32
    %c0_i32_0 = arith.constant 0 : i32
    %c0_i32_1 = arith.constant 0 : i32
    return %c0_i32, %c0_i32_0 : i32, i32
  }
  func.func @transform_10(%arg0: i32) -> (i32, i32) {
    %c0_i32 = arith.constant 0 : i32
    %c0_i32_0 = arith.constant 0 : i32
    %c0_i32_1 = arith.constant 0 : i32
    return %c0_i32, %c0_i32_0 : i32, i32
  }
  func.func @transform_11(%arg0: i32) -> (i32, i32) {
    %c0_i32 = arith.constant 0 : i32
    %c0_i32_0 = arith.constant 0 : i32
    %c0_i32_1 = arith.constant 0 : i32
    return %c0_i32, %c0_i32_0 : i32, i32
  }
  func.func @transform_12(%arg0: i32) -> (i32, i32) {
    %c0_i32 = arith.constant 0 : i32
    %c0_i32_0 = arith.constant 0 : i32
    %c0_i32_1 = arith.constant 0 : i32
    return %c0_i32, %c0_i32_0 : i32, i32
  }
  func.func @transform_13(%arg0: i32) -> (i32, i32) {
    %c0_i32 = arith.constant 0 : i32
    %c0_i32_0 = arith.constant 0 : i32
    %c0_i32_1 = arith.constant 0 : i32
    return %c0_i32, %c0_i32_0 : i32, i32
  }
  func.func @transform_14(%arg0: i32) -> (i32, i32) {
    %c0_i32 = arith.constant 0 : i32
    %c0_i32_0 = arith.constant 0 : i32
    %c0_i32_1 = arith.constant 0 : i32
    return %c0_i32, %c0_i32_0 : i32, i32
  }
  func.func @transform_15(%arg0: i32) -> (i32, i32) {
    %c0_i32 = arith.constant 0 : i32
    %c0_i32_0 = arith.constant 0 : i32
    %c0_i32_1 = arith.constant 0 : i32
    return %c0_i32, %c0_i32_0 : i32, i32
  }
  func.func @transform_16(%arg0: i32) -> (i32, i32) {
    %c0_i32 = arith.constant 0 : i32
    %c0_i32_0 = arith.constant 0 : i32
    return %arg0, %c0_i32 : i32, i32
  }
  func.func @transform_17(%arg0: i32) -> (i32, i32) {
    %c0_i32 = arith.constant 0 : i32
    %c0_i32_0 = arith.constant 0 : i32
    return %arg0, %c0_i32 : i32, i32
  }
}

</mosaic_0001>

<llo_original>
// kernel: tpu_custom_call.1
$region0: #{tpu_custom_call.1}
  #allocation0 [shape = 'u32[]', space=smem, size = 0x4, offset = 0x4, fixed_abs, tag = 'smem constant byte address 0x4 - core index']
  #allocation1 [shape = 'u32[144,128]{1,0:T(1,128)}', space=vmem, size = 0x12000, scoped, tag = 'internal scratch']
  #allocation2 [shape = 'f32[32,64]{1,0:T(8,128)}', space=vmem, size = 0x4000, scoped, tag = 'scratch operand']
  #allocation3 [shape = 'f32[1,1]{1,0:T(1,128)S(1)}', space=vmem, size = 0x200, scoped, tag = 'scoped memory for tpu_custom_call.1']
  %s0 = inlined_call_operand.vmem [shape: f32[64,32], index: 0, kind: input, shape index: {}]
  %s1 = inlined_call_operand.vmem [shape: f32[64,32], index: 1, kind: input, shape index: {}]
  %s2 = inlined_call_operand.vmem [shape: s32[192,1], index: 2, kind: input, shape index: {}]
  %s3 = inlined_call_operand.vmem [shape: s32[192,1], index: 3, kind: input, shape index: {}]
  %s4 = inlined_call_operand.vmem [shape: s32[2,1,96], index: 4, kind: input, shape index: {}]
  %s5 = inlined_call_operand.vmem [shape: f32[192,1], index: 5, kind: input, shape index: {}]
  %s6 = inlined_call_operand.vmem [shape: f32[192,1], index: 6, kind: input, shape index: {}]
  %s7 = inlined_call_operand.vmem [shape: f32[32,32], index: 7, kind: input, shape index: {}]
  %s8 = inlined_call_operand.vmem [shape: f32[32,32], index: 8, kind: input, shape index: {}]
  %s9 = inlined_call_operand.vmem [shape: f32[32,64], index: 9, kind: input, shape index: {}]
  %s10 = inlined_call_operand.vmem [shape: f32[1,64], index: 10, kind: input, shape index: {}]
  %s11 = inlined_call_operand.vmem [shape: f32[1,64], index: 11, kind: input, shape index: {}]
  %s12 = inlined_call_operand.vmem [shape: f32[1,64], index: 12, kind: input, shape index: {}]
  %s13 = inlined_call_operand.<no memory space> [shape: f32[1,1], index: 13, kind: input, shape index: {}]
  %s14 = inlined_call_operand.vmem [shape: f32[64,128], index: 14, kind: input, shape index: {}]
  %s15 = inlined_call_operand.vmem [shape: f32[1,128], index: 15, kind: input, shape index: {}]
  %s16 = inlined_call_operand.vmem [shape: f32[64,32], index: 16, kind: output, shape index: {0}]
  %s17 = inlined_call_operand.vmem [shape: f32[64,32], index: 17, kind: output, shape index: {1}]
  %18 = xla_tuple %s16, %s17
  %s19 = sld [smem:[#allocation0]]
  $region105: #{tpu_custom_call.1} parent=0
    _
  %s21 = ssub.s32 1, %s19
  %s22 = scalar_select 0, %s21, %s19
  %v23 = vstv %s13
  %24 = vst [vmem:[#allocation3] sm:$0x1] %v23
  loop: start=0, step=1, limit=4
  $region2: #{tpu_custom_call.1} parent=0 // loop_pre_header
    _
  $region3: #{tpu_custom_call.1} parent=0 // loop_header
    %s26 = sphi 0, %s30
    %p27 = scmp.ge.s32.totalorder %s26, 4
    %s36 = sphi 0, %s38
    %s39 = sphi 0, %s36
    %s40 = sphi 0, %s39
    %s56 = sphi 0, %s40
    %s62 = sphi 0, %s64
    %s65 = sphi 0, %s62
    %s66 = sphi 0, %s65
    %s82 = sphi 0, %s66
    %s88 = sphi 0, %s90
    %s91 = sphi 0, %s88
    %s92 = sphi 0, %s91
    %s108 = sphi 0, %s92
    %s114 = sphi 0, %s116
    %s117 = sphi 0, %s114
    %s118 = sphi 0, %s117
    %s134 = sphi 0, %s118
    %s140 = sphi 0, %s142
    %s143 = sphi 0, %s140
    %s144 = sphi 0, %s143
    %s160 = sphi 0, %s144
    %s166 = sphi 0, %s168
    %s169 = sphi 0, %s166
    %s170 = sphi 0, %s169
    %s186 = sphi 0, %s170
    %s192 = sphi 0, %s194
    %s195 = sphi 0, %s192
    %s196 = sphi 0, %s195
    %s212 = sphi 0, %s196
    %s216 = sphi 0, %s216
    %s218 = sphi 0, %s216
    %s219 = sphi 0, %s218
    %s233 = sphi 0, %s219
    %s237 = sphi 0, %s237
    %s239 = sphi 0, %s237
    %s240 = sphi 0, %s239
    %s254 = sphi 0, %s240
    %s258 = sphi 0, %s258
    %s260 = sphi 0, %s258
    %s261 = sphi 0, %s260
    %s275 = sphi 0, %s261
    %s279 = sphi 0, %s279
    %s281 = sphi 0, %s279
    %s282 = sphi 0, %s281
    %s296 = sphi 0, %s282
    %s300 = sphi 0, %s300
    %s302 = sphi 0, %s300
    %s303 = sphi 0, %s302
    %s317 = sphi 0, %s303
    %s321 = sphi 0, %s321
    %s323 = sphi 0, %s321
    %s324 = sphi 0, %s323
    %s338 = sphi 0, %s324
    %s342 = sphi 0, %s342
    %s344 = sphi 0, %s342
    %s345 = sphi 0, %s344
    %s359 = sphi 0, %s345
    %s363 = sphi 0, %s363
    %s365 = sphi 0, %s363
    %s366 = sphi 0, %s365
    %s380 = sphi 0, %s366
    %s384 = sphi 0, %s384
    %s386 = sphi 0, %s384
    %s387 = sphi 0, %s386
    %s401 = sphi 0, %s387
    %s407 = sphi 0, %s409
    %s410 = sphi 0, %s407
    %s411 = sphi 0, %s410
    %s427 = sphi 0, %s411
    %s433 = sphi 0, %s435
    %s436 = sphi 0, %s433
    %s437 = sphi 0, %s436
    %s453 = sphi 0, %s437
  $region4: #{tpu_custom_call.1} parent=0 // loop_header_branch
    %29 = sbr.rel (%p27) target = $region8
  $region5: #{tpu_custom_call.1} parent=0 // loop_body
    %s31 = ssub.s32 %s26, 1
    %s32 = ssub.s32 %s26, 2
    %s33 = sadd.s32 %s26, 1
    %s34 = ssub.s32 %s26, %s33
    %p35 = scmp.eq.s32.totalorder %s34, 0
    %s37 = sadd.s32 %s36, 1
    %s38 = scalar_select %p35, %s36, %s37
    %p41 = pneg %p35
    %p42 = scmp.eq.s32.totalorder %s26, 1
    %p43 = por %p41, %p42
    %p44 = scmp.ne.s32.totalorder %s36, %s39
    %p45 = scmp.eq.s32.totalorder %s26, 0
    %p46 = por %p44, %p45
    %p47 = scmp.ne.s32.totalorder %s36, %s39
    %p48 = scmp.eq.s32.totalorder %s31, 1
    %p49 = por %p47, %p48
    %p50 = scmp.ne.s32.totalorder %s39, %s40
    %p51 = scmp.eq.s32.totalorder %s31, 0
    %p52 = por %p50, %p51
    %p53 = scmp.ne.s32.totalorder %s39, %s40
    %p54 = scmp.eq.s32.totalorder %s32, 1
    %p55 = por %p53, %p54
    %p57 = scmp.ne.s32.totalorder %s40, %s56
    %p58 = scmp.eq.s32.totalorder %s32, 0
    %p59 = por %p57, %p58
    %s60 = ssub.s32 %s26, %s33
    %p61 = scmp.eq.s32.totalorder %s60, 0
    %s63 = sadd.s32 %s62, 1
    %s64 = scalar_select %p61, %s62, %s63
    %p67 = pneg %p61
    %p68 = scmp.eq.s32.totalorder %s26, 1
    %p69 = por %p67, %p68
    %p70 = scmp.ne.s32.totalorder %s62, %s65
    %p71 = scmp.eq.s32.totalorder %s26, 0
    %p72 = por %p70, %p71
    %p73 = scmp.ne.s32.totalorder %s62, %s65
    %p74 = scmp.eq.s32.totalorder %s31, 1
    %p75 = por %p73, %p74
    %p76 = scmp.ne.s32.totalorder %s65, %s66
    %p77 = scmp.eq.s32.totalorder %s31, 0
    %p78 = por %p76, %p77
    %p79 = scmp.ne.s32.totalorder %s65, %s66
    %p80 = scmp.eq.s32.totalorder %s32, 1
    %p81 = por %p79, %p80
    %p83 = scmp.ne.s32.totalorder %s66, %s82
    %p84 = scmp.eq.s32.totalorder %s32, 0
    %p85 = por %p83, %p84
    %s86 = ssub.s32 %s26, %s33
    %p87 = scmp.eq.s32.totalorder %s86, 0
    %s89 = sadd.s32 %s88, 1
    %s90 = scalar_select %p87, %s88, %s89
    %p93 = pneg %p87
    %p94 = scmp.eq.s32.totalorder %s26, 1
    %p95 = por %p93, %p94
    %p96 = scmp.ne.s32.totalorder %s88, %s91
    %p97 = scmp.eq.s32.totalorder %s26, 0
    %p98 = por %p96, %p97
    %p99 = scmp.ne.s32.totalorder %s88, %s91
    %p100 = scmp.eq.s32.totalorder %s31, 1
    %p101 = por %p99, %p100
    %p102 = scmp.ne.s32.totalorder %s91, %s92
    %p103 = scmp.eq.s32.totalorder %s31, 0
    %p104 = por %p102, %p103
    %p105 = scmp.ne.s32.totalorder %s91, %s92
    %p106 = scmp.eq.s32.totalorder %s32, 1
    %p107 = por %p105, %p106
    %p109 = scmp.ne.s32.totalorder %s92, %s108
    %p110 = scmp.eq.s32.totalorder %s32, 0
    %p111 = por %p109, %p110
    %s112 = ssub.s32 %s26, %s33
    %p113 = scmp.eq.s32.totalorder %s112, 0
    %s115 = sadd.s32 %s114, 1
    %s116 = scalar_select %p113, %s114, %s115
    %p119 = pneg %p113
    %p120 = scmp.eq.s32.totalorder %s26, 1
    %p121 = por %p119, %p120
    %p122 = scmp.ne.s32.totalorder %s114, %s117
    %p123 = scmp.eq.s32.totalorder %s26, 0
    %p124 = por %p122, %p123
    %p125 = scmp.ne.s32.totalorder %s114, %s117
    %p126 = scmp.eq.s32.totalorder %s31, 1
    %p127 = por %p125, %p126
    %p128 = scmp.ne.s32.totalorder %s117, %s118
    %p129 = scmp.eq.s32.totalorder %s31, 0
    %p130 = por %p128, %p129
    %p131 = scmp.ne.s32.totalorder %s117, %s118
    %p132 = scmp.eq.s32.totalorder %s32, 1
    %p133 = por %p131, %p132
    %p135 = scmp.ne.s32.totalorder %s118, %s134
    %p136 = scmp.eq.s32.totalorder %s32, 0
    %p137 = por %p135, %p136
    %s138 = ssub.s32 %s26, %s33
    %p139 = scmp.eq.s32.totalorder %s138, 0
    %s141 = sadd.s32 %s140, 1
    %s142 = scalar_select %p139, %s140, %s141
    %p145 = pneg %p139
    %p146 = scmp.eq.s32.totalorder %s26, 1
    %p147 = por %p145, %p146
    %p148 = scmp.ne.s32.totalorder %s140, %s143
    %p149 = scmp.eq.s32.totalorder %s26, 0
    %p150 = por %p148, %p149
    %p151 = scmp.ne.s32.totalorder %s140, %s143
    %p152 = scmp.eq.s32.totalorder %s31, 1
    %p153 = por %p151, %p152
    %p154 = scmp.ne.s32.totalorder %s143, %s144
    %p155 = scmp.eq.s32.totalorder %s31, 0
    %p156 = por %p154, %p155
    %p157 = scmp.ne.s32.totalorder %s143, %s144
    %p158 = scmp.eq.s32.totalorder %s32, 1
    %p159 = por %p157, %p158
    %p161 = scmp.ne.s32.totalorder %s144, %s160
    %p162 = scmp.eq.s32.totalorder %s32, 0
    %p163 = por %p161, %p162
    %s164 = ssub.s32 %s26, %s33
    %p165 = scmp.eq.s32.totalorder %s164, 0
    %s167 = sadd.s32 %s166, 1
    %s168 = scalar_select %p165, %s166, %s167
    %p171 = pneg %p165
    %p172 = scmp.eq.s32.totalorder %s26, 1
    %p173 = por %p171, %p172
    %p174 = scmp.ne.s32.totalorder %s166, %s169
    %p175 = scmp.eq.s32.totalorder %s26, 0
    %p176 = por %p174, %p175
    %p177 = scmp.ne.s32.totalorder %s166, %s169
    %p178 = scmp.eq.s32.totalorder %s31, 1
    %p179 = por %p177, %p178
    %p180 = scmp.ne.s32.totalorder %s169, %s170
    %p181 = scmp.eq.s32.totalorder %s31, 0
    %p182 = por %p180, %p181
    %p183 = scmp.ne.s32.totalorder %s169, %s170
    %p184 = scmp.eq.s32.totalorder %s32, 1
    %p185 = por %p183, %p184
    %p187 = scmp.ne.s32.totalorder %s170, %s186
    %p188 = scmp.eq.s32.totalorder %s32, 0
    %p189 = por %p187, %p188
    %s190 = ssub.s32 %s26, %s33
    %p191 = scmp.eq.s32.totalorder %s190, 0
    %s193 = sadd.s32 %s192, 1
    %s194 = scalar_select %p191, %s192, %s193
    %p197 = pneg %p191
    %p198 = scmp.eq.s32.totalorder %s26, 1
    %p199 = por %p197, %p198
    %p200 = scmp.ne.s32.totalorder %s192, %s195
    %p201 = scmp.eq.s32.totalorder %s26, 0
    %p202 = por %p200, %p201
    %p203 = scmp.ne.s32.totalorder %s192, %s195
    %p204 = scmp.eq.s32.totalorder %s31, 1
    %p205 = por %p203, %p204
    %p206 = scmp.ne.s32.totalorder %s195, %s196
    %p207 = scmp.eq.s32.totalorder %s31, 0
    %p208 = por %p206, %p207
    %p209 = scmp.ne.s32.totalorder %s195, %s196
    %p210 = scmp.eq.s32.totalorder %s32, 1
    %p211 = por %p209, %p210
    %p213 = scmp.ne.s32.totalorder %s196, %s212
    %p214 = scmp.eq.s32.totalorder %s32, 0
    %p215 = por %p213, %p214
    %s217 = sadd.s32 %s216, 1
    %p220 = scmp.eq.s32.totalorder %s26, 1
    %p221 = scmp.ne.s32.totalorder %s216, %s218
    %p222 = scmp.eq.s32.totalorder %s26, 0
    %p223 = por %p221, %p222
    %p224 = scmp.ne.s32.totalorder %s216, %s218
    %p225 = scmp.eq.s32.totalorder %s31, 1
    %p226 = por %p224, %p225
    %p227 = scmp.ne.s32.totalorder %s218, %s219
    %p228 = scmp.eq.s32.totalorder %s31, 0
    %p229 = por %p227, %p228
    %p230 = scmp.ne.s32.totalorder %s218, %s219
    %p231 = scmp.eq.s32.totalorder %s32, 1
    %p232 = por %p230, %p231
    %p234 = scmp.ne.s32.totalorder %s219, %s233
    %p235 = scmp.eq.s32.totalorder %s32, 0
    %p236 = por %p234, %p235
    %s238 = sadd.s32 %s237, 1
    %p241 = scmp.eq.s32.totalorder %s26, 1
    %p242 = scmp.ne.s32.totalorder %s237, %s239
    %p243 = scmp.eq.s32.totalorder %s26, 0
    %p244 = por %p242, %p243
    %p245 = scmp.ne.s32.totalorder %s237, %s239
    %p246 = scmp.eq.s32.totalorder %s31, 1
    %p247 = por %p245, %p246
    %p248 = scmp.ne.s32.totalorder %s239, %s240
    %p249 = scmp.eq.s32.totalorder %s31, 0
    %p250 = por %p248, %p249
    %p251 = scmp.ne.s32.totalorder %s239, %s240
    %p252 = scmp.eq.s32.totalorder %s32, 1
    %p253 = por %p251, %p252
    %p255 = scmp.ne.s32.totalorder %s240, %s254
    %p256 = scmp.eq.s32.totalorder %s32, 0
    %p257 = por %p255, %p256
    %s259 = sadd.s32 %s258, 1
    %p262 = scmp.eq.s32.totalorder %s26, 1
    %p263 = scmp.ne.s32.totalorder %s258, %s260
    %p264 = scmp.eq.s32.totalorder %s26, 0
    %p265 = por %p263, %p264
    %p266 = scmp.ne.s32.totalorder %s258, %s260
    %p267 = scmp.eq.s32.totalorder %s31, 1
    %p268 = por %p266, %p267
    %p269 = scmp.ne.s32.totalorder %s260, %s261
    %p270 = scmp.eq.s32.totalorder %s31, 0
    %p271 = por %p269, %p270
    %p272 = scmp.ne.s32.totalorder %s260, %s261
    %p273 = scmp.eq.s32.totalorder %s32, 1
    %p274 = por %p272, %p273
    %p276 = scmp.ne.s32.totalorder %s261, %s275
    %p277 = scmp.eq.s32.totalorder %s32, 0
    %p278 = por %p276, %p277
    %s280 = sadd.s32 %s279, 1
    %p283 = scmp.eq.s32.totalorder %s26, 1
    %p284 = scmp.ne.s32.totalorder %s279, %s281
    %p285 = scmp.eq.s32.totalorder %s26, 0
    %p286 = por %p284, %p285
    %p287 = scmp.ne.s32.totalorder %s279, %s281
    %p288 = scmp.eq.s32.totalorder %s31, 1
    %p289 = por %p287, %p288
    %p290 = scmp.ne.s32.totalorder %s281, %s282
    %p291 = scmp.eq.s32.totalorder %s31, 0
    %p292 = por %p290, %p291
    %p293 = scmp.ne.s32.totalorder %s281, %s282
    %p294 = scmp.eq.s32.totalorder %s32, 1
    %p295 = por %p293, %p294
    %p297 = scmp.ne.s32.totalorder %s282, %s296
    %p298 = scmp.eq.s32.totalorder %s32, 0
    %p299 = por %p297, %p298
    %s301 = sadd.s32 %s300, 1
    %p304 = scmp.eq.s32.totalorder %s26, 1
    %p305 = scmp.ne.s32.totalorder %s300, %s302
    %p306 = scmp.eq.s32.totalorder %s26, 0
    %p307 = por %p305, %p306
    %p308 = scmp.ne.s32.totalorder %s300, %s302
    %p309 = scmp.eq.s32.totalorder %s31, 1
    %p310 = por %p308, %p309
    %p311 = scmp.ne.s32.totalorder %s302, %s303
    %p312 = scmp.eq.s32.totalorder %s31, 0
    %p313 = por %p311, %p312
    %p314 = scmp.ne.s32.totalorder %s302, %s303
    %p315 = scmp.eq.s32.totalorder %s32, 1
    %p316 = por %p314, %p315
    %p318 = scmp.ne.s32.totalorder %s303, %s317
    %p319 = scmp.eq.s32.totalorder %s32, 0
    %p320 = por %p318, %p319
    %s322 = sadd.s32 %s321, 1
    %p325 = scmp.eq.s32.totalorder %s26, 1
    %p326 = scmp.ne.s32.totalorder %s321, %s323
    %p327 = scmp.eq.s32.totalorder %s26, 0
    %p328 = por %p326, %p327
    %p329 = scmp.ne.s32.totalorder %s321, %s323
    %p330 = scmp.eq.s32.totalorder %s31, 1
    %p331 = por %p329, %p330
    %p332 = scmp.ne.s32.totalorder %s323, %s324
    %p333 = scmp.eq.s32.totalorder %s31, 0
    %p334 = por %p332, %p333
    %p335 = scmp.ne.s32.totalorder %s323, %s324
    %p336 = scmp.eq.s32.totalorder %s32, 1
    %p337 = por %p335, %p336
    %p339 = scmp.ne.s32.totalorder %s324, %s338
    %p340 = scmp.eq.s32.totalorder %s32, 0
    %p341 = por %p339, %p340
    %s343 = sadd.s32 %s342, 1
    %p346 = scmp.eq.s32.totalorder %s26, 1
    %p347 = scmp.ne.s32.totalorder %s342, %s344
    %p348 = scmp.eq.s32.totalorder %s26, 0
    %p349 = por %p347, %p348
    %p350 = scmp.ne.s32.totalorder %s342, %s344
    %p351 = scmp.eq.s32.totalorder %s31, 1
    %p352 = por %p350, %p351
    %p353 = scmp.ne.s32.totalorder %s344, %s345
    %p354 = scmp.eq.s32.totalorder %s31, 0
    %p355 = por %p353, %p354
    %p356 = scmp.ne.s32.totalorder %s344, %s345
    %p357 = scmp.eq.s32.totalorder %s32, 1
    %p358 = por %p356, %p357
    %p360 = scmp.ne.s32.totalorder %s345, %s359
    %p361 = scmp.eq.s32.totalorder %s32, 0
    %p362 = por %p360, %p361
    %s364 = sadd.s32 %s363, 1
    %p367 = scmp.eq.s32.totalorder %s26, 1
    %p368 = scmp.ne.s32.totalorder %s363, %s365
    %p369 = scmp.eq.s32.totalorder %s26, 0
    %p370 = por %p368, %p369
    %p371 = scmp.ne.s32.totalorder %s363, %s365
    %p372 = scmp.eq.s32.totalorder %s31, 1
    %p373 = por %p371, %p372
    %p374 = scmp.ne.s32.totalorder %s365, %s366
    %p375 = scmp.eq.s32.totalorder %s31, 0
    %p376 = por %p374, %p375
    %p377 = scmp.ne.s32.totalorder %s365, %s366
    %p378 = scmp.eq.s32.totalorder %s32, 1
    %p379 = por %p377, %p378
    %p381 = scmp.ne.s32.totalorder %s366, %s380
    %p382 = scmp.eq.s32.totalorder %s32, 0
    %p383 = por %p381, %p382
    %s385 = sadd.s32 %s384, 1
    %p388 = scmp.eq.s32.totalorder %s26, 1
    %p389 = scmp.ne.s32.totalorder %s384, %s386
    %p390 = scmp.eq.s32.totalorder %s26, 0
    %p391 = por %p389, %p390
    %p392 = scmp.ne.s32.totalorder %s384, %s386
    %p393 = scmp.eq.s32.totalorder %s31, 1
    %p394 = por %p392, %p393
    %p395 = scmp.ne.s32.totalorder %s386, %s387
    %p396 = scmp.eq.s32.totalorder %s31, 0
    %p397 = por %p395, %p396
    %p398 = scmp.ne.s32.totalorder %s386, %s387
    %p399 = scmp.eq.s32.totalorder %s32, 1
    %p400 = por %p398, %p399
    %p402 = scmp.ne.s32.totalorder %s387, %s401
    %p403 = scmp.eq.s32.totalorder %s32, 0
    %p404 = por %p402, %p403
    %s405 = ssub.s32 %s26, %s33
    %p406 = scmp.eq.s32.totalorder %s405, 0
    %s408 = sadd.s32 %s407, 1
    %s409 = scalar_select %p406, %s407, %s408
    %p412 = pneg %p406
    %p413 = scmp.eq.s32.totalorder %s26, 1
    %p414 = por %p412, %p413
    %p415 = scmp.ne.s32.totalorder %s407, %s410
    %p416 = scmp.eq.s32.totalorder %s26, 0
    %p417 = por %p415, %p416
    %p418 = scmp.ne.s32.totalorder %s407, %s410
    %p419 = scmp.eq.s32.totalorder %s31, 1
    %p420 = por %p418, %p419
    %p421 = scmp.ne.s32.totalorder %s410, %s411
    %p422 = scmp.eq.s32.totalorder %s31, 0
    %p423 = por %p421, %p422
    %p424 = scmp.ne.s32.totalorder %s410, %s411
    %p425 = scmp.eq.s32.totalorder %s32, 1
    %p426 = por %p424, %p425
    %p428 = scmp.ne.s32.totalorder %s411, %s427
    %p429 = scmp.eq.s32.totalorder %s32, 0
    %p430 = por %p428, %p429
    %s431 = ssub.s32 %s26, %s33
    %p432 = scmp.eq.s32.totalorder %s431, 0
    %s434 = sadd.s32 %s433, 1
    %s435 = scalar_select %p432, %s433, %s434
    %p438 = pneg %p432
    %p439 = scmp.eq.s32.totalorder %s26, 1
    %p440 = por %p438, %p439
    %p441 = scmp.ne.s32.totalorder %s433, %s436
    %p442 = scmp.eq.s32.totalorder %s26, 0
    %p443 = por %p441, %p442
    %p444 = scmp.ne.s32.totalorder %s433, %s436
    %p445 = scmp.eq.s32.totalorder %s31, 1
    %p446 = por %p444, %p445
    %p447 = scmp.ne.s32.totalorder %s436, %s437
    %p448 = scmp.eq.s32.totalorder %s31, 0
    %p449 = por %p447, %p448
    %p450 = scmp.ne.s32.totalorder %s436, %s437
    %p451 = scmp.eq.s32.totalorder %s32, 1
    %p452 = por %p450, %p451
    %p454 = scmp.ne.s32.totalorder %s437, %s453
    %p455 = scmp.eq.s32.totalorder %s32, 0
    %p456 = por %p454, %p455
    %p457 = scmp.le.s32.totalorder 1, %s26
    %p458 = scmp.lt.s32.totalorder %s26, 3
    %p459 = pnand %p457, %p458
    %p460 = pneg %p459
    // Predicated region
    $region9: #{tpu_custom_call.1} parent=5 // pred_check
      _
    $region10: #{tpu_custom_call.1} parent=5 // pred_check_branch
      %462 = sbr.rel (%p459) target = $region12
    $region11: #{tpu_custom_call.1} parent=5 // pred_region
      %s463 = ssub.s32 %s26, 1
      // Predicated region
      $region13: #{tpu_custom_call.1} parent=11 // pred_check
        %p464 = pneg %p229
      $region14: #{tpu_custom_call.1} parent=11 // pred_check_branch
        %466 = sbr.rel (%p464) target = $region16
      $region15: #{tpu_custom_call.1} parent=11 // pred_region
        _
      $region16: #{tpu_custom_call.1} parent=11 // pred_fallthru
        _
      // Predicated region
      $region17: #{tpu_custom_call.1} parent=11 // pred_check
        %p467 = pneg %p250
      $region18: #{tpu_custom_call.1} parent=11 // pred_check_branch
        %469 = sbr.rel (%p467) target = $region20
      $region19: #{tpu_custom_call.1} parent=11 // pred_region
        _
      $region20: #{tpu_custom_call.1} parent=11 // pred_fallthru
        _
      // Predicated region
      $region21: #{tpu_custom_call.1} parent=11 // pred_check
        %p470 = pneg %p271
      $region22: #{tpu_custom_call.1} parent=11 // pred_check_branch
        %472 = sbr.rel (%p470) target = $region24
      $region23: #{tpu_custom_call.1} parent=11 // pred_region
        _
      $region24: #{tpu_custom_call.1} parent=11 // pred_fallthru
        _
      // Predicated region
      $region25: #{tpu_custom_call.1} parent=11 // pred_check
        %p473 = pneg %p292
      $region26: #{tpu_custom_call.1} parent=11 // pred_check_branch
        %475 = sbr.rel (%p473) target = $region28
      $region27: #{tpu_custom_call.1} parent=11 // pred_region
        _
      $region28: #{tpu_custom_call.1} parent=11 // pred_fallthru
        _
      // Predicated region
      $region29: #{tpu_custom_call.1} parent=11 // pred_check
        %p476 = pneg %p313
      $region30: #{tpu_custom_call.1} parent=11 // pred_check_branch
        %478 = sbr.rel (%p476) target = $region32
      $region31: #{tpu_custom_call.1} parent=11 // pred_region
        _
      $region32: #{tpu_custom_call.1} parent=11 // pred_fallthru
        _
      // Predicated region
      $region33: #{tpu_custom_call.1} parent=11 // pred_check
        %p479 = pneg %p334
      $region34: #{tpu_custom_call.1} parent=11 // pred_check_branch
        %481 = sbr.rel (%p479) target = $region36
      $region35: #{tpu_custom_call.1} parent=11 // pred_region
        _
      $region36: #{tpu_custom_call.1} parent=11 // pred_fallthru
        _
      // Predicated region
      $region37: #{tpu_custom_call.1} parent=11 // pred_check
        %p482 = pneg %p355
      $region38: #{tpu_custom_call.1} parent=11 // pred_check_branch
        %484 = sbr.rel (%p482) target = $region40
      $region39: #{tpu_custom_call.1} parent=11 // pred_region
        _
      $region40: #{tpu_custom_call.1} parent=11 // pred_fallthru
        _
      // Predicated region
      $region41: #{tpu_custom_call.1} parent=11 // pred_check
        %p485 = pneg %p376
      $region42: #{tpu_custom_call.1} parent=11 // pred_check_branch
        %487 = sbr.rel (%p485) target = $region44
      $region43: #{tpu_custom_call.1} parent=11 // pred_region
        _
      $region44: #{tpu_custom_call.1} parent=11 // pred_fallthru
        _
      // Predicated region
      $region45: #{tpu_custom_call.1} parent=11 // pred_check
        %p488 = pneg %p397
      $region46: #{tpu_custom_call.1} parent=11 // pred_check_branch
        %490 = sbr.rel (%p488) target = $region48
      $region47: #{tpu_custom_call.1} parent=11 // pred_region
        _
      $region48: #{tpu_custom_call.1} parent=11 // pred_fallthru
        _
    $region12: #{tpu_custom_call.1} parent=5 // pred_fallthru
      _
    %p491 = scmp.lt.s32.totalorder %s26, 2
    // Predicated region
    $region49: #{tpu_custom_call.1} parent=5 // pred_check
      %p492 = pneg %p491
    $region50: #{tpu_custom_call.1} parent=5 // pred_check_branch
      %494 = sbr.rel (%p492) target = $region52
    $region51: #{tpu_custom_call.1} parent=5 // pred_region
      // Predicated region
      $region53: #{tpu_custom_call.1} parent=51 // pred_check
        %p495 = pneg %p46
      $region54: #{tpu_custom_call.1} parent=51 // pred_check_branch
        %497 = sbr.rel (%p495) target = $region56
      $region55: #{tpu_custom_call.1} parent=51 // pred_region
        %s498 = smul.u32 4, %s26
        %p499 = scmp.lt.s32.totalorder %s498, 7
        %s500 = scalar_select %p499, %s498, 7
        %s501 = smul.addr %s500, 8
        %s502 = scalar_lea.vmem %s0, %s501
        %s503 = smul.u32 4, %s26
      $region56: #{tpu_custom_call.1} parent=51 // pred_fallthru
        _
      // Predicated region
      $region57: #{tpu_custom_call.1} parent=51 // pred_check
        %p504 = pneg %p72
      $region58: #{tpu_custom_call.1} parent=51 // pred_check_branch
        %506 = sbr.rel (%p504) target = $region60
      $region59: #{tpu_custom_call.1} parent=51 // pred_region
        %s507 = smul.u32 4, %s26
        %p508 = scmp.lt.s32.totalorder %s507, 7
        %s509 = scalar_select %p508, %s507, 7
        %s510 = smul.addr %s509, 8
        %s511 = scalar_lea.vmem %s1, %s510
        %s512 = smul.u32 4, %s26
      $region60: #{tpu_custom_call.1} parent=51 // pred_fallthru
        _
      // Predicated region
      $region61: #{tpu_custom_call.1} parent=51 // pred_check
        %p513 = pneg %p98
      $region62: #{tpu_custom_call.1} parent=51 // pred_check_branch
        %515 = sbr.rel (%p513) target = $region64
      $region63: #{tpu_custom_call.1} parent=51 // pred_region
        %s516 = smul.u32 12, %s26
        %p517 = scmp.lt.s32.totalorder %s516, 23
        %s518 = scalar_select %p517, %s516, 23
        %s519 = smul.addr %s518, 8
        %s520 = scalar_lea.vmem %s2, %s519
        %s521 = smul.u32 12, %s26
      $region64: #{tpu_custom_call.1} parent=51 // pred_fallthru
        _
      // Predicated region
      $region65: #{tpu_custom_call.1} parent=51 // pred_check
        %p522 = pneg %p124
      $region66: #{tpu_custom_call.1} parent=51 // pred_check_branch
        %524 = sbr.rel (%p522) target = $region68
      $region67: #{tpu_custom_call.1} parent=51 // pred_region
        %s525 = smul.u32 12, %s26
        %p526 = scmp.lt.s32.totalorder %s525, 23
        %s527 = scalar_select %p526, %s525, 23
        %s528 = smul.addr %s527, 8
        %s529 = scalar_lea.vmem %s3, %s528
        %s530 = smul.u32 12, %s26
      $region68: #{tpu_custom_call.1} parent=51 // pred_fallthru
        _
      // Predicated region
      $region69: #{tpu_custom_call.1} parent=51 // pred_check
        %p531 = pneg %p150
      $region70: #{tpu_custom_call.1} parent=51 // pred_check_branch
        %533 = sbr.rel (%p531) target = $region72
      $region71: #{tpu_custom_call.1} parent=51 // pred_region
        %p534 = scmp.lt.s32.totalorder %s26, 1
        %s535 = scalar_select %p534, %s26, 1
        %s536 = scalar_lea.vmem %s4, %s535
      $region72: #{tpu_custom_call.1} parent=51 // pred_fallthru
        _
      // Predicated region
      $region73: #{tpu_custom_call.1} parent=51 // pred_check
        %p537 = pneg %p176
      $region74: #{tpu_custom_call.1} parent=51 // pred_check_branch
        %539 = sbr.rel (%p537) target = $region76
      $region75: #{tpu_custom_call.1} parent=51 // pred_region
        %s540 = smul.u32 12, %s26
        %p541 = scmp.lt.s32.totalorder %s540, 23
        %s542 = scalar_select %p541, %s540, 23
        %s543 = smul.addr %s542, 8
        %s544 = scalar_lea.vmem %s5, %s543
        %s545 = smul.u32 12, %s26
      $region76: #{tpu_custom_call.1} parent=51 // pred_fallthru
        _
      // Predicated region
      $region77: #{tpu_custom_call.1} parent=51 // pred_check
        %p546 = pneg %p202
      $region78: #{tpu_custom_call.1} parent=51 // pred_check_branch
        %548 = sbr.rel (%p546) target = $region80
      $region79: #{tpu_custom_call.1} parent=51 // pred_region
        %s549 = smul.u32 12, %s26
        %p550 = scmp.lt.s32.totalorder %s549, 23
        %s551 = scalar_select %p550, %s549, 23
        %s552 = smul.addr %s551, 8
        %s553 = scalar_lea.vmem %s6, %s552
        %s554 = smul.u32 12, %s26
      $region80: #{tpu_custom_call.1} parent=51 // pred_fallthru
        _
    $region52: #{tpu_custom_call.1} parent=5 // pred_fallthru
      _
    %p555 = scmp.le.s32.totalorder 1, %s26
    %p556 = scmp.lt.s32.totalorder %s26, 3
    %p557 = pnand %p555, %p556
    %p558 = pneg %p557
    // Predicated region
    $region81: #{tpu_custom_call.1} parent=5 // pred_check
      _
    $region82: #{tpu_custom_call.1} parent=5 // pred_check_branch
      %560 = sbr.rel (%p557) target = $region84
    $region83: #{tpu_custom_call.1} parent=5 // pred_region
      %s561 = ssub.s32 %s26, 1
      %s562 = smul.u32 4, %s31
      %p563 = scmp.lt.s32.totalorder %s562, 7
      %s564 = scalar_select %p563, %s562, 7
      %s565 = smul.addr %s564, 8
      %s566 = scalar_lea.vmem %s0, %s565
      %p567 = pneg %p52
      %p568 = pneg %p49
      %s569 = smul.u32 4, %s31
      %p570 = scmp.lt.s32.totalorder %s569, 7
      %s571 = scalar_select %p570, %s569, 7
      %s572 = smul.addr %s571, 8
      %s573 = scalar_lea.vmem %s1, %s572
      %p574 = pneg %p78
      %p575 = pneg %p75
      %s576 = smul.u32 12, %s31
      %p577 = scmp.lt.s32.totalorder %s576, 23
      %s578 = scalar_select %p577, %s576, 23
      %s579 = smul.addr %s578, 8
      %s580 = scalar_lea.vmem %s2, %s579
      %p581 = pneg %p104
      %p582 = pneg %p101
      %s583 = smul.u32 12, %s31
      %p584 = scmp.lt.s32.totalorder %s583, 23
      %s585 = scalar_select %p584, %s583, 23
      %s586 = smul.addr %s585, 8
      %s587 = scalar_lea.vmem %s3, %s586
      %p588 = pneg %p130
      %p589 = pneg %p127
      %p590 = scmp.lt.s32.totalorder %s31, 1
      %s591 = scalar_select %p590, %s31, 1
      %s592 = scalar_lea.vmem %s4, %s591
      %p593 = pneg %p156
      %p594 = pneg %p153
      %s595 = smul.u32 12, %s31
      %p596 = scmp.lt.s32.totalorder %s595, 23
      %s597 = scalar_select %p596, %s595, 23
      %s598 = smul.addr %s597, 8
      %s599 = scalar_lea.vmem %s5, %s598
      %p600 = pneg %p182
      %p601 = pneg %p179
      %s602 = smul.u32 12, %s31
      %p603 = scmp.lt.s32.totalorder %s602, 23
      %s604 = scalar_select %p603, %s602, 23
      %s605 = smul.addr %s604, 8
      %s606 = scalar_lea.vmem %s6, %s605
      %p607 = pneg %p208
      %p608 = pneg %p205
      %p609 = pneg %p229
      %p610 = pneg %p226
      %p611 = pneg %p250
      %p612 = pneg %p247
      %p613 = pneg %p271
      %p614 = pneg %p268
      %p615 = pneg %p292
      %p616 = pneg %p289
      %p617 = pneg %p313
      %p618 = pneg %p310
      %p619 = pneg %p334
      %p620 = pneg %p331
      %p621 = pneg %p355
      %p622 = pneg %p352
      %p623 = pneg %p376
      %p624 = pneg %p373
      %p625 = pneg %p397
      %p626 = pneg %p394
      %p627 = pneg %p423
      %p628 = pneg %p420
      %s629 = smul.u32 4, %s31
      %p630 = scmp.lt.s32.totalorder %s629, 7
      %s631 = scalar_select %p630, %s629, 7
      %s632 = smul.addr %s631, 8
      %s633 = scalar_lea.vmem %s16, %s632
      %p634 = pneg %p449
      %p635 = pneg %p446
      %s636 = smul.u32 4, %s31
      %p637 = scmp.lt.s32.totalorder %s636, 7
      %s638 = scalar_select %p637, %s636, 7
      %s639 = smul.addr %s638, 8
      %s640 = scalar_lea.vmem %s17, %s639
      %s641 = smul.u32 4, %s31
      %p642 = scmp.lt.s32.totalorder %s641, 7
      %s643 = scalar_select %p642, %s641, 7
      %s644 = smul.addr %s643, 8
      %s645 = scalar_lea.vmem %s0, %s644
      %s646 = smul.u32 4, %s31
      %s647 = smul.u32 4, %s31
      %p648 = scmp.lt.s32.totalorder %s647, 7
      %s649 = scalar_select %p648, %s647, 7
      %s650 = smul.addr %s649, 8
      %s651 = scalar_lea.vmem %s1, %s650
      %s652 = smul.u32 4, %s31
      %s653 = smul.u32 12, %s31
      %p654 = scmp.lt.s32.totalorder %s653, 23
      %s655 = scalar_select %p654, %s653, 23
      %s656 = smul.addr %s655, 8
      %s657 = scalar_lea.vmem %s2, %s656
      %s658 = smul.u32 12, %s31
      %s659 = smul.u32 12, %s31
      %p660 = scmp.lt.s32.totalorder %s659, 23
      %s661 = scalar_select %p660, %s659, 23
      %s662 = smul.addr %s661, 8
      %s663 = scalar_lea.vmem %s3, %s662
      %s664 = smul.u32 12, %s31
      %p665 = scmp.lt.s32.totalorder %s31, 1
      %s666 = scalar_select %p665, %s31, 1
      %s667 = scalar_lea.vmem %s4, %s666
      %s668 = smul.u32 12, %s31
      %p669 = scmp.lt.s32.totalorder %s668, 23
      %s670 = scalar_select %p669, %s668, 23
      %s671 = smul.addr %s670, 8
      %s672 = scalar_lea.vmem %s5, %s671
      %s673 = smul.u32 12, %s31
      %s674 = smul.u32 12, %s31
      %p675 = scmp.lt.s32.totalorder %s674, 23
      %s676 = scalar_select %p675, %s674, 23
      %s677 = smul.addr %s676, 8
      %s678 = scalar_lea.vmem %s6, %s677
      %s679 = smul.u32 12, %s31
      %s680 = smul.u32 4, %s31
      %p681 = scmp.lt.s32.totalorder %s680, 7
      %s682 = scalar_select %p681, %s680, 7
      %s683 = smul.addr %s682, 8
      %s684 = scalar_lea.vmem %s16, %s683
      %s685 = smul.u32 4, %s31
      %s686 = smul.u32 4, %s31
      %p687 = scmp.lt.s32.totalorder %s686, 7
      %s688 = scalar_select %p687, %s686, 7
      %s689 = smul.addr %s688, 8
      %s690 = scalar_lea.vmem %s17, %s689
      %s691 = smul.u32 4, %s31
      %v692 = vld [vmem:[%s645] sm:$0xff]
      %v693 = vld [vmem:[%s645 + $0x8] sm:$0xff]
      %v694 = vld [vmem:[%s645 + $0x10] sm:$0xff]
      %v695 = vld [vmem:[%s645 + $0x18] sm:$0xff]
      %v696 = vld [vmem:[%s651] sm:$0xff]
      %v697 = vld [vmem:[%s651 + $0x8] sm:$0xff]
      %v698 = vld [vmem:[%s651 + $0x10] sm:$0xff]
      %v699 = vld [vmem:[%s651 + $0x18] sm:$0xff]
      %v700 = vlaneseq
      %v701 = vand.u32 %v700, 127
      %v702 = vld [vmem:[%s657] sm:$0xff]
      %v703 = vld [vmem:[%s657 + $0x8] sm:$0xff]
      %v704 = vld [vmem:[%s657 + $0x10] sm:$0xff]
      %v705 = vld [vmem:[%s657 + $0x18] sm:$0xff]
      %v706 = vld [vmem:[%s657 + $0x20] sm:$0xff]
      %v707 = vld [vmem:[%s657 + $0x28] sm:$0xff]
      %v708 = vld [vmem:[%s657 + $0x30] sm:$0xff]
      %v709 = vld [vmem:[%s657 + $0x38] sm:$0xff]
      %v710 = vld [vmem:[%s657 + $0x40] sm:$0xff]
      %v711 = vld [vmem:[%s657 + $0x48] sm:$0xff]
      %v712 = vld [vmem:[%s657 + $0x50] sm:$0xff]
      %v713 = vld [vmem:[%s657 + $0x58] sm:$0xff]
      %714 = vset.pattern.permute.xlu0 0
      %715 = vperm.xlu0 %714, %v702
      %v716 = vpop.permute.xlu0 %715
      %717 = vset.pattern.permute.xlu0 0
      %718 = vperm.xlu0 %717, %v703
      %v719 = vpop.permute.xlu0 %718
      %720 = vset.pattern.permute.xlu0 0
      %721 = vperm.xlu0 %720, %v704
      %v722 = vpop.permute.xlu0 %721
      %723 = vset.pattern.permute.xlu0 0
      %724 = vperm.xlu0 %723, %v705
      %v725 = vpop.permute.xlu0 %724
      %726 = vset.pattern.permute.xlu0 0
      %727 = vperm.xlu0 %726, %v706
      %v728 = vpop.permute.xlu0 %727
      %729 = vset.pattern.permute.xlu0 0
      %730 = vperm.xlu0 %729, %v707
      %v731 = vpop.permute.xlu0 %730
      %732 = vset.pattern.permute.xlu0 0
      %733 = vperm.xlu0 %732, %v708
      %v734 = vpop.permute.xlu0 %733
      %735 = vset.pattern.permute.xlu0 0
      %736 = vperm.xlu0 %735, %v709
      %v737 = vpop.permute.xlu0 %736
      %738 = vset.pattern.permute.xlu0 0
      %739 = vperm.xlu0 %738, %v710
      %v740 = vpop.permute.xlu0 %739
      %741 = vset.pattern.permute.xlu0 0
      %742 = vperm.xlu0 %741, %v711
      %v743 = vpop.permute.xlu0 %742
      %744 = vset.pattern.permute.xlu0 0
      %745 = vperm.xlu0 %744, %v712
      %v746 = vpop.permute.xlu0 %745
      %747 = vset.pattern.permute.xlu0 0
      %748 = vperm.xlu0 %747, %v713
      %v749 = vpop.permute.xlu0 %748
      %vm750 = vcmp.eq.s32.totalorder %v701, %v716
      %vm751 = vcmp.eq.s32.totalorder %v701, %v719
      %vm752 = vcmp.eq.s32.totalorder %v701, %v722
      %vm753 = vcmp.eq.s32.totalorder %v701, %v725
      %vm754 = vcmp.eq.s32.totalorder %v701, %v728
      %vm755 = vcmp.eq.s32.totalorder %v701, %v731
      %vm756 = vcmp.eq.s32.totalorder %v701, %v734
      %vm757 = vcmp.eq.s32.totalorder %v701, %v737
      %vm758 = vcmp.eq.s32.totalorder %v701, %v740
      %vm759 = vcmp.eq.s32.totalorder %v701, %v743
      %vm760 = vcmp.eq.s32.totalorder %v701, %v746
      %vm761 = vcmp.eq.s32.totalorder %v701, %v749
      %v762 = vsel %vm750, 1.0, 0.0
      %v763 = vsel %vm751, 1.0, 0.0
      %v764 = vsel %vm752, 1.0, 0.0
      %v765 = vsel %vm753, 1.0, 0.0
      %v766 = vsel %vm754, 1.0, 0.0
      %v767 = vsel %vm755, 1.0, 0.0
      %v768 = vsel %vm756, 1.0, 0.0
      %v769 = vsel %vm757, 1.0, 0.0
      %v770 = vsel %vm758, 1.0, 0.0
      %v771 = vsel %vm759, 1.0, 0.0
      %v772 = vsel %vm760, 1.0, 0.0
      %v773 = vsel %vm761, 1.0, 0.0
      %v774 = vld [vmem:[%s663] sm:$0xff]
      %v775 = vld [vmem:[%s663 + $0x8] sm:$0xff]
      %v776 = vld [vmem:[%s663 + $0x10] sm:$0xff]
      %v777 = vld [vmem:[%s663 + $0x18] sm:$0xff]
      %v778 = vld [vmem:[%s663 + $0x20] sm:$0xff]
      %v779 = vld [vmem:[%s663 + $0x28] sm:$0xff]
      %v780 = vld [vmem:[%s663 + $0x30] sm:$0xff]
      %v781 = vld [vmem:[%s663 + $0x38] sm:$0xff]
      %v782 = vld [vmem:[%s663 + $0x40] sm:$0xff]
      %v783 = vld [vmem:[%s663 + $0x48] sm:$0xff]
      %v784 = vld [vmem:[%s663 + $0x50] sm:$0xff]
      %v785 = vld [vmem:[%s663 + $0x58] sm:$0xff]
      %786 = vset.pattern.permute.xlu0 0
      %787 = vperm.xlu0 %786, %v774
      %v788 = vpop.permute.xlu0 %787
      %789 = vset.pattern.permute.xlu0 0
      %790 = vperm.xlu0 %789, %v775
      %v791 = vpop.permute.xlu0 %790
      %792 = vset.pattern.permute.xlu0 0
      %793 = vperm.xlu0 %792, %v776
      %v794 = vpop.permute.xlu0 %793
      %795 = vset.pattern.permute.xlu0 0
      %796 = vperm.xlu0 %795, %v777
      %v797 = vpop.permute.xlu0 %796
      %798 = vset.pattern.permute.xlu0 0
      %799 = vperm.xlu0 %798, %v778
      %v800 = vpop.permute.xlu0 %799
      %801 = vset.pattern.permute.xlu0 0
      %802 = vperm.xlu0 %801, %v779
      %v803 = vpop.permute.xlu0 %802
      %804 = vset.pattern.permute.xlu0 0
      %805 = vperm.xlu0 %804, %v780
      %v806 = vpop.permute.xlu0 %805
      %807 = vset.pattern.permute.xlu0 0
      %808 = vperm.xlu0 %807, %v781
      %v809 = vpop.permute.xlu0 %808
      %810 = vset.pattern.permute.xlu0 0
      %811 = vperm.xlu0 %810, %v782
      %v812 = vpop.permute.xlu0 %811
      %813 = vset.pattern.permute.xlu0 0
      %814 = vperm.xlu0 %813, %v783
      %v815 = vpop.permute.xlu0 %814
      %816 = vset.pattern.permute.xlu0 0
      %817 = vperm.xlu0 %816, %v784
      %v818 = vpop.permute.xlu0 %817
      %819 = vset.pattern.permute.xlu0 0
      %820 = vperm.xlu0 %819, %v785
      %v821 = vpop.permute.xlu0 %820
      %vm822 = vcmp.eq.s32.totalorder %v701, %v788
      %vm823 = vcmp.eq.s32.totalorder %v701, %v791
      %vm824 = vcmp.eq.s32.totalorder %v701, %v794
      %vm825 = vcmp.eq.s32.totalorder %v701, %v797
      %vm826 = vcmp.eq.s32.totalorder %v701, %v800
      %vm827 = vcmp.eq.s32.totalorder %v701, %v803
      %vm828 = vcmp.eq.s32.totalorder %v701, %v806
      %vm829 = vcmp.eq.s32.totalorder %v701, %v809
      %vm830 = vcmp.eq.s32.totalorder %v701, %v812
      %vm831 = vcmp.eq.s32.totalorder %v701, %v815
      %vm832 = vcmp.eq.s32.totalorder %v701, %v818
      %vm833 = vcmp.eq.s32.totalorder %v701, %v821
      %v834 = vsel %vm822, 1.0, 0.0
      %v835 = vsel %vm823, 1.0, 0.0
      %v836 = vsel %vm824, 1.0, 0.0
      %v837 = vsel %vm825, 1.0, 0.0
      %v838 = vsel %vm826, 1.0, 0.0
      %v839 = vsel %vm827, 1.0, 0.0
      %v840 = vsel %vm828, 1.0, 0.0
      %v841 = vsel %vm829, 1.0, 0.0
      %v842 = vsel %vm830, 1.0, 0.0
      %v843 = vsel %vm831, 1.0, 0.0
      %v844 = vsel %vm832, 1.0, 0.0
      %v845 = vsel %vm833, 1.0, 0.0
      %v846 = vlaneseq
      %v847 = vshrl.u32 %v846, 7
      %v848 = vadd.s32 %v847, 8
      %v849 = vadd.s32 %v847, 16
      %v850 = vadd.s32 %v847, 24
      %v851 = vld [vmem:[%s667] sm:$0x1]
      %v852 = vlaneseq
      %v853 = vshrl.u32 %v852, 7
      %v854 = vsub.s32 0, %v853
      %v855 = vrot.slane %v851, %v854
      %vm856 = vcmp.eq.s32.totalorder %v847, %v855
      %vm857 = vcmp.eq.s32.totalorder %v848, %v855
      %vm858 = vcmp.eq.s32.totalorder %v849, %v855
      %vm859 = vcmp.eq.s32.totalorder %v850, %v855
      %v860 = vsel %vm856, 1.0, 0.0
      %v861 = vsel %vm857, 1.0, 0.0
      %v862 = vsel %vm858, 1.0, 0.0
      %v863 = vsel %vm859, 1.0, 0.0
      %vm864 = vcmask 261120
      %v866 = vsel %vm864, %v762, 0
      %v869 = vsel %vm864, %v763, 0
      %v872 = vsel %vm864, %v764, 0
      %v875 = vsel %vm864, %v765, 0
      %v878 = vsel %vm864, %v766, 0
      %v881 = vsel %vm864, %v767, 0
      %v884 = vsel %vm864, %v768, 0
      %v887 = vsel %vm864, %v769, 0
      %v890 = vsel %vm864, %v770, 0
      %v893 = vsel %vm864, %v771, 0
      %v896 = vsel %vm864, %v772, 0
      %v899 = vsel %vm864, %v773, 0
      %901 = vmatprep.subr.mxu0 0.0
      %902 = vmatpush1.msra.mxu0 %v692
      %903 = vmatprep.subr.mxu0 0.0
      %904 = vmatpush1.msra.mxu0 %v693
      %905 = vmatprep.subr.mxu0 0.0
      %906 = vmatpush1.msra.mxu0 %v694
      %907 = vmatprep.subr.mxu0 0.0
      %908 = vmatpush1.msra.mxu0 %v695
      %909 = vmatprep.subr.mxu0 0.0
      %910 = vmatpush1.msra.mxu0 0.0
      %911 = vmatprep.subr.mxu0 0.0
      %912 = vmatpush1.msra.mxu0 0.0
      %913 = vmatprep.subr.mxu0 0.0
      %914 = vmatpush1.msra.mxu0 0.0
      %915 = vmatprep.subr.mxu0 0.0
      %916 = vmatpush1.msra.mxu0 0.0
      %917 = vmatprep.subr.mxu0 0.0
      %918 = vmatpush1.msra.mxu0 0.0
      %919 = vmatprep.subr.mxu0 0.0
      %920 = vmatpush1.msra.mxu0 0.0
      %921 = vmatprep.subr.mxu0 0.0
      %922 = vmatpush1.msra.mxu0 0.0
      %923 = vmatprep.subr.mxu0 0.0
      %924 = vmatpush1.msra.mxu0 0.0
      %925 = vmatprep.subr.mxu0 0.0
      %926 = vmatpush1.msra.mxu0 0.0
      %927 = vmatprep.subr.mxu0 0.0
      %928 = vmatpush1.msra.mxu0 0.0
      %929 = vmatprep.subr.mxu0 0.0
      %930 = vmatpush1.msra.mxu0 0.0
      %931 = vmatprep.subr.mxu0 0.0
      %932 = vmatpush1.msra.mxu0 0.0
      %933 = vmatprep.subr.mxu0 0.0
      %934 = vmatpush1.msra.mxu0 0.0
      %935 = vmatprep.subr.mxu0 0.0
      %936 = vmatpush1.msra.mxu0 0.0
      %937 = vmatprep.subr.mxu0 0.0
      %938 = vmatpush1.msra.mxu0 0.0
      %939 = vmatprep.subr.mxu0 0.0
      %940 = vmatpush1.msra.mxu0 0.0
      %941 = vmatprep.subr.mxu0 0.0
      %942 = vmatpush1.msra.mxu0 0.0
      %943 = vmatprep.subr.mxu0 0.0
      %944 = vmatpush1.msra.mxu0 0.0
      %945 = vmatprep.subr.mxu0 0.0
      %946 = vmatpush1.msra.mxu0 0.0
      %947 = vmatprep.subr.mxu0 0.0
      %948 = vmatpush1.msra.mxu0 0.0
      %949 = vmatprep.subr.mxu0 0.0
      %950 = vmatpush1.msra.mxu0 0.0
      %951 = vmatprep.subr.mxu0 0.0
      %952 = vmatpush1.msra.mxu0 0.0
      %953 = vmatprep.subr.mxu0 0.0
      %954 = vmatpush1.msra.mxu0 0.0
      %955 = vmatprep.subr.mxu0 0.0
      %956 = vmatpush1.msra.mxu0 0.0
      %957 = vmatprep.subr.mxu0 0.0
      %958 = vmatpush1.msra.mxu0 0.0
      %959 = vmatprep.subr.mxu0 0.0
      %960 = vmatpush1.msra.mxu0 0.0
      %961 = vmatprep.subr.mxu0 0.0
      %962 = vmatpush1.msra.mxu0 0.0
      %963 = vmatprep.subr.mxu0 0.0
      %964 = vmatpush1.msra.mxu0 0.0
      %965 = vmatprep.mubr.f32.mxu0 0.0
      %966 = vmatmul.mubr.f32.gmra.mrb[0].mxu0 %v866
      %v967 = vpop.f32.mrb[0].mxu0
      %v968 = vadd.f32 0.0, %v967
      %v969 = vpop.f32.mrb[0].mxu0
      %970 = vmatprep.mubr.f32.mxu0 0.0
      %971 = vmatmul.mubr.f32.gmra.mrb[0].mxu0 %v869
      %v972 = vpop.f32.mrb[0].mxu0
      %v973 = vadd.f32 0.0, %v972
      %v974 = vpop.f32.mrb[0].mxu0
      %975 = vmatprep.mubr.f32.mxu0 0.0
      %976 = vmatmul.mubr.f32.gmra.mrb[0].mxu0 %v872
      %v977 = vpop.f32.mrb[0].mxu0
      %v978 = vadd.f32 0.0, %v977
      %v979 = vpop.f32.mrb[0].mxu0
      %980 = vmatprep.mubr.f32.mxu0 0.0
      %981 = vmatmul.mubr.f32.gmra.mrb[0].mxu0 %v875
      %v982 = vpop.f32.mrb[0].mxu0
      %v983 = vadd.f32 0.0, %v982
      %v984 = vpop.f32.mrb[0].mxu0
      %985 = vmatprep.mubr.f32.mxu0 0.0
      %986 = vmatmul.mubr.f32.gmra.mrb[0].mxu0 %v878
      %v987 = vpop.f32.mrb[0].mxu0
      %v988 = vadd.f32 0.0, %v987
      %v989 = vpop.f32.mrb[0].mxu0
      %990 = vmatprep.mubr.f32.mxu0 0.0
      %991 = vmatmul.mubr.f32.gmra.mrb[0].mxu0 %v881
      %v992 = vpop.f32.mrb[0].mxu0
      %v993 = vadd.f32 0.0, %v992
      %v994 = vpop.f32.mrb[0].mxu0
      %995 = vmatprep.mubr.f32.mxu0 0.0
      %996 = vmatmul.mubr.f32.gmra.mrb[0].mxu0 %v884
      %v997 = vpop.f32.mrb[0].mxu0
      %v998 = vadd.f32 0.0, %v997
      %v999 = vpop.f32.mrb[0].mxu0
      %1000 = vmatprep.mubr.f32.mxu0 0.0
      %1001 = vmatmul.mubr.f32.gmra.mrb[0].mxu0 %v887
      %v1002 = vpop.f32.mrb[0].mxu0
      %v1003 = vadd.f32 0.0, %v1002
      %v1004 = vpop.f32.mrb[0].mxu0
      %1005 = vmatprep.mubr.f32.mxu0 0.0
      %1006 = vmatmul.mubr.f32.gmra.mrb[0].mxu0 %v890
      %v1007 = vpop.f32.mrb[0].mxu0
      %v1008 = vadd.f32 0.0, %v1007
      %v1009 = vpop.f32.mrb[0].mxu0
      %1010 = vmatprep.mubr.f32.mxu0 0.0
      %1011 = vmatmul.mubr.f32.gmra.mrb[0].mxu0 %v893
      %v1012 = vpop.f32.mrb[0].mxu0
      %v1013 = vadd.f32 0.0, %v1012
      %v1014 = vpop.f32.mrb[0].mxu0
      %1015 = vmatprep.mubr.f32.mxu0 0.0
      %1016 = vmatmul.mubr.f32.gmra.mrb[0].mxu0 %v896
      %v1017 = vpop.f32.mrb[0].mxu0
      %v1018 = vadd.f32 0.0, %v1017
      %v1019 = vpop.f32.mrb[0].mxu0
      %1020 = vmatprep.mubr.f32.mxu0 0.0
      %1021 = vmatmul.mubr.f32.gmra.mrb[0].mxu0 %v899
      %v1022 = vpop.f32.mrb[0].mxu0
      %v1023 = vadd.f32 0.0, %v1022
      %v1024 = vpop.f32.mrb[0].mxu0
      %1025 = vdwg.mxu0
      %v1027 = vsel %vm864, %v834, 0
      %v1030 = vsel %vm864, %v835, 0
      %v1033 = vsel %vm864, %v836, 0
      %v1036 = vsel %vm864, %v837, 0
      %v1039 = vsel %vm864, %v838, 0
      %v1042 = vsel %vm864, %v839, 0
      %v1045 = vsel %vm864, %v840, 0
      %v1048 = vsel %vm864, %v841, 0
      %v1051 = vsel %vm864, %v842, 0
      %v1054 = vsel %vm864, %v843, 0
      %v1057 = vsel %vm864, %v844, 0
      %v1060 = vsel %vm864, %v845, 0
      %1062 = vmatprep.subr.mxu0 0.0
      %1063 = vmatpush1.msra.mxu0 %v692
      %1064 = vmatprep.subr.mxu0 0.0
      %1065 = vmatpush1.msra.mxu0 %v693
      %1066 = vmatprep.subr.mxu0 0.0
      %1067 = vmatpush1.msra.mxu0 %v694
      %1068 = vmatprep.subr.mxu0 0.0
      %1069 = vmatpush1.msra.mxu0 %v695
      %1070 = vmatprep.subr.mxu0 0.0
      %1071 = vmatpush1.msra.mxu0 0.0
      %1072 = vmatprep.subr.mxu0 0.0
      %1073 = vmatpush1.msra.mxu0 0.0
      %1074 = vmatprep.subr.mxu0 0.0
      %1075 = vmatpush1.msra.mxu0 0.0
      %1076 = vmatprep.subr.mxu0 0.0
      %1077 = vmatpush1.msra.mxu0 0.0
      %1078 = vmatprep.subr.mxu0 0.0
      %1079 = vmatpush1.msra.mxu0 0.0
      %1080 = vmatprep.subr.mxu0 0.0
      %1081 = vmatpush1.msra.mxu0 0.0
      %1082 = vmatprep.subr.mxu0 0.0
      %1083 = vmatpush1.msra.mxu0 0.0
      %1084 = vmatprep.subr.mxu0 0.0
      %1085 = vmatpush1.msra.mxu0 0.0
      %1086 = vmatprep.subr.mxu0 0.0
      %1087 = vmatpush1.msra.mxu0 0.0
      %1088 = vmatprep.subr.mxu0 0.0
      %1089 = vmatpush1.msra.mxu0 0.0
      %1090 = vmatprep.subr.mxu0 0.0
      %1091 = vmatpush1.msra.mxu0 0.0
      %1092 = vmatprep.subr.mxu0 0.0
      %1093 = vmatpush1.msra.mxu0 0.0
      %1094 = vmatprep.subr.mxu0 0.0
      %1095 = vmatpush1.msra.mxu0 0.0
      %1096 = vmatprep.subr.mxu0 0.0
      %1097 = vmatpush1.msra.mxu0 0.0
      %1098 = vmatprep.subr.mxu0 0.0
      %1099 = vmatpush1.msra.mxu0 0.0
      %1100 = vmatprep.subr.mxu0 0.0
      %1101 = vmatpush1.msra.mxu0 0.0
      %1102 = vmatprep.subr.mxu0 0.0
      %1103 = vmatpush1.msra.mxu0 0.0
      %1104 = vmatprep.subr.mxu0 0.0
      %1105 = vmatpush1.msra.mxu0 0.0
      %1106 = vmatprep.subr.mxu0 0.0
      %1107 = vmatpush1.msra.mxu0 0.0
      %1108 = vmatprep.subr.mxu0 0.0
      %1109 = vmatpush1.msra.mxu0 0.0
      %1110 = vmatprep.subr.mxu0 0.0
      %1111 = vmatpush1.msra.mxu0 0.0
      %1112 = vmatprep.subr.mxu0 0.0
      %1113 = vmatpush1.msra.mxu0 0.0
      %1114 = vmatprep.subr.mxu0 0.0
      %1115 = vmatpush1.msra.mxu0 0.0
      %1116 = vmatprep.subr.mxu0 0.0
      %1117 = vmatpush1.msra.mxu0 0.0
      %1118 = vmatprep.subr.mxu0 0.0
      %1119 = vmatpush1.msra.mxu0 0.0
      %1120 = vmatprep.subr.mxu0 0.0
      %1121 = vmatpush1.msra.mxu0 0.0
      %1122 = vmatprep.subr.mxu0 0.0
      %1123 = vmatpush1.msra.mxu0 0.0
      %1124 = vmatprep.subr.mxu0 0.0
      %1125 = vmatpush1.msra.mxu0 0.0
      %1126 = vmatprep.mubr.f32.mxu0 0.0
      %1127 = vmatmul.mubr.f32.gmra.mrb[0].mxu0 %v1027
      %v1128 = vpop.f32.mrb[0].mxu0
      %v1129 = vadd.f32 0.0, %v1128
      %v1130 = vpop.f32.mrb[0].mxu0
      %1131 = vmatprep.mubr.f32.mxu0 0.0
      %1132 = vmatmul.mubr.f32.gmra.mrb[0].mxu0 %v1030
      %v1133 = vpop.f32.mrb[0].mxu0
      %v1134 = vadd.f32 0.0, %v1133
      %v1135 = vpop.f32.mrb[0].mxu0
      %1136 = vmatprep.mubr.f32.mxu0 0.0
      %1137 = vmatmul.mubr.f32.gmra.mrb[0].mxu0 %v1033
      %v1138 = vpop.f32.mrb[0].mxu0
      %v1139 = vadd.f32 0.0, %v1138
      %v1140 = vpop.f32.mrb[0].mxu0
      %1141 = vmatprep.mubr.f32.mxu0 0.0
      %1142 = vmatmul.mubr.f32.gmra.mrb[0].mxu0 %v1036
      %v1143 = vpop.f32.mrb[0].mxu0
      %v1144 = vadd.f32 0.0, %v1143
      %v1145 = vpop.f32.mrb[0].mxu0
      %1146 = vmatprep.mubr.f32.mxu0 0.0
      %1147 = vmatmul.mubr.f32.gmra.mrb[0].mxu0 %v1039
      %v1148 = vpop.f32.mrb[0].mxu0
      %v1149 = vadd.f32 0.0, %v1148
      %v1150 = vpop.f32.mrb[0].mxu0
      %1151 = vmatprep.mubr.f32.mxu0 0.0
      %1152 = vmatmul.mubr.f32.gmra.mrb[0].mxu0 %v1042
      %v1153 = vpop.f32.mrb[0].mxu0
      %v1154 = vadd.f32 0.0, %v1153
      %v1155 = vpop.f32.mrb[0].mxu0
      %1156 = vmatprep.mubr.f32.mxu0 0.0
      %1157 = vmatmul.mubr.f32.gmra.mrb[0].mxu0 %v1045
      %v1158 = vpop.f32.mrb[0].mxu0
      %v1159 = vadd.f32 0.0, %v1158
      %v1160 = vpop.f32.mrb[0].mxu0
      %1161 = vmatprep.mubr.f32.mxu0 0.0
      %1162 = vmatmul.mubr.f32.gmra.mrb[0].mxu0 %v1048
      %v1163 = vpop.f32.mrb[0].mxu0
      %v1164 = vadd.f32 0.0, %v1163
      %v1165 = vpop.f32.mrb[0].mxu0
      %1166 = vmatprep.mubr.f32.mxu0 0.0
      %1167 = vmatmul.mubr.f32.gmra.mrb[0].mxu0 %v1051
      %v1168 = vpop.f32.mrb[0].mxu0
      %v1169 = vadd.f32 0.0, %v1168
      %v1170 = vpop.f32.mrb[0].mxu0
      %1171 = vmatprep.mubr.f32.mxu0 0.0
      %1172 = vmatmul.mubr.f32.gmra.mrb[0].mxu0 %v1054
      %v1173 = vpop.f32.mrb[0].mxu0
      %v1174 = vadd.f32 0.0, %v1173
      %v1175 = vpop.f32.mrb[0].mxu0
      %1176 = vmatprep.mubr.f32.mxu0 0.0
      %1177 = vmatmul.mubr.f32.gmra.mrb[0].mxu0 %v1057
      %v1178 = vpop.f32.mrb[0].mxu0
      %v1179 = vadd.f32 0.0, %v1178
      %v1180 = vpop.f32.mrb[0].mxu0
      %1181 = vmatprep.mubr.f32.mxu0 0.0
      %1182 = vmatmul.mubr.f32.gmra.mrb[0].mxu0 %v1060
      %v1183 = vpop.f32.mrb[0].mxu0
      %v1184 = vadd.f32 0.0, %v1183
      %v1185 = vpop.f32.mrb[0].mxu0
      %1186 = vdwg.mxu0
      %v1187 = vld [vmem:[%s7] sm:$0xff]
      %v1188 = vld [vmem:[%s7 + $0x8] sm:$0xff]
      %v1189 = vld [vmem:[%s7 + $0x10] sm:$0xff]
      %v1190 = vld [vmem:[%s7 + $0x18] sm:$0xff]
      %v1192 = vsel %vm864, %v968, 0
      %v1195 = vsel %vm864, %v973, 0
      %v1198 = vsel %vm864, %v978, 0
      %v1201 = vsel %vm864, %v983, 0
      %v1204 = vsel %vm864, %v988, 0
      %v1207 = vsel %vm864, %v993, 0
      %v1210 = vsel %vm864, %v998, 0
      %v1213 = vsel %vm864, %v1003, 0
      %v1216 = vsel %vm864, %v1008, 0
      %v1219 = vsel %vm864, %v1013, 0
      %v1222 = vsel %vm864, %v1018, 0
      %v1225 = vsel %vm864, %v1023, 0
      %1227 = vmatprep.subr.mxu0 0.0
      %1228 = vmatpush1.msra.mxu0 %v1187
      %1229 = vmatprep.subr.mxu0 0.0
      %1230 = vmatpush1.msra.mxu0 %v1188
      %1231 = vmatprep.subr.mxu0 0.0
      %1232 = vmatpush1.msra.mxu0 %v1189
      %1233 = vmatprep.subr.mxu0 0.0
      %1234 = vmatpush1.msra.mxu0 %v1190
      %1235 = vmatprep.subr.mxu0 0.0
      %1236 = vmatpush1.msra.mxu0 0.0
      %1237 = vmatprep.subr.mxu0 0.0
      %1238 = vmatpush1.msra.mxu0 0.0
      %1239 = vmatprep.subr.mxu0 0.0
      %1240 = vmatpush1.msra.mxu0 0.0
      %1241 = vmatprep.subr.mxu0 0.0
      %1242 = vmatpush1.msra.mxu0 0.0
      %1243 = vmatprep.subr.mxu0 0.0
      %1244 = vmatpush1.msra.mxu0 0.0
      %1245 = vmatprep.subr.mxu0 0.0
      %1246 = vmatpush1.msra.mxu0 0.0
      %1247 = vmatprep.subr.mxu0 0.0
      %1248 = vmatpush1.msra.mxu0 0.0
      %1249 = vmatprep.subr.mxu0 0.0
      %1250 = vmatpush1.msra.mxu0 0.0
      %1251 = vmatprep.subr.mxu0 0.0
      %1252 = vmatpush1.msra.mxu0 0.0
      %1253 = vmatprep.subr.mxu0 0.0
      %1254 = vmatpush1.msra.mxu0 0.0
      %1255 = vmatprep.subr.mxu0 0.0
      %1256 = vmatpush1.msra.mxu0 0.0
      %1257 = vmatprep.subr.mxu0 0.0
      %1258 = vmatpush1.msra.mxu0 0.0
      %1259 = vmatprep.subr.mxu0 0.0
      %1260 = vmatpush1.msra.mxu0 0.0
      %1261 = vmatprep.subr.mxu0 0.0
      %1262 = vmatpush1.msra.mxu0 0.0
      %1263 = vmatprep.subr.mxu0 0.0
      %1264 = vmatpush1.msra.mxu0 0.0
      %1265 = vmatprep.subr.mxu0 0.0
      %1266 = vmatpush1.msra.mxu0 0.0
      %1267 = vmatprep.subr.mxu0 0.0
      %1268 = vmatpush1.msra.mxu0 0.0
      %1269 = vmatprep.subr.mxu0 0.0
      %1270 = vmatpush1.msra.mxu0 0.0
      %1271 = vmatprep.subr.mxu0 0.0
      %1272 = vmatpush1.msra.mxu0 0.0
      %1273 = vmatprep.subr.mxu0 0.0
      %1274 = vmatpush1.msra.mxu0 0.0
      %1275 = vmatprep.subr.mxu0 0.0
      %1276 = vmatpush1.msra.mxu0 0.0
      %1277 = vmatprep.subr.mxu0 0.0
      %1278 = vmatpush1.msra.mxu0 0.0
      %1279 = vmatprep.subr.mxu0 0.0
      %1280 = vmatpush1.msra.mxu0 0.0
      %1281 = vmatprep.subr.mxu0 0.0
      %1282 = vmatpush1.msra.mxu0 0.0
      %1283 = vmatprep.subr.mxu0 0.0
      %1284 = vmatpush1.msra.mxu0 0.0
      %1285 = vmatprep.subr.mxu0 0.0
      %1286 = vmatpush1.msra.mxu0 0.0
      %1287 = vmatprep.subr.mxu0 0.0
      %1288 = vmatpush1.msra.mxu0 0.0
      %1289 = vmatprep.subr.mxu0 0.0
      %1290 = vmatpush1.msra.mxu0 0.0
      %1291 = vmatprep.mubr.f32.mxu0 0.0
      %1292 = vmatmul.mubr.f32.gmra.mrb[0].mxu0 %v1192
      %v1293 = vpop.f32.mrb[0].mxu0
      %v1294 = vadd.f32 0.0, %v1293
      %v1295 = vpop.f32.mrb[0].mxu0
      %1296 = vmatprep.mubr.f32.mxu0 0.0
      %1297 = vmatmul.mubr.f32.gmra.mrb[0].mxu0 %v1195
      %v1298 = vpop.f32.mrb[0].mxu0
      %v1299 = vadd.f32 0.0, %v1298
      %v1300 = vpop.f32.mrb[0].mxu0
      %1301 = vmatprep.mubr.f32.mxu0 0.0
      %1302 = vmatmul.mubr.f32.gmra.mrb[0].mxu0 %v1198
      %v1303 = vpop.f32.mrb[0].mxu0
      %v1304 = vadd.f32 0.0, %v1303
      %v1305 = vpop.f32.mrb[0].mxu0
      %1306 = vmatprep.mubr.f32.mxu0 0.0
      %1307 = vmatmul.mubr.f32.gmra.mrb[0].mxu0 %v1201
      %v1308 = vpop.f32.mrb[0].mxu0
      %v1309 = vadd.f32 0.0, %v1308
      %v1310 = vpop.f32.mrb[0].mxu0
      %1311 = vmatprep.mubr.f32.mxu0 0.0
      %1312 = vmatmul.mubr.f32.gmra.mrb[0].mxu0 %v1204
      %v1313 = vpop.f32.mrb[0].mxu0
      %v1314 = vadd.f32 0.0, %v1313
      %v1315 = vpop.f32.mrb[0].mxu0
      %1316 = vmatprep.mubr.f32.mxu0 0.0
      %1317 = vmatmul.mubr.f32.gmra.mrb[0].mxu0 %v1207
      %v1318 = vpop.f32.mrb[0].mxu0
      %v1319 = vadd.f32 0.0, %v1318
      %v1320 = vpop.f32.mrb[0].mxu0
      %1321 = vmatprep.mubr.f32.mxu0 0.0
      %1322 = vmatmul.mubr.f32.gmra.mrb[0].mxu0 %v1210
      %v1323 = vpop.f32.mrb[0].mxu0
      %v1324 = vadd.f32 0.0, %v1323
      %v1325 = vpop.f32.mrb[0].mxu0
      %1326 = vmatprep.mubr.f32.mxu0 0.0
      %1327 = vmatmul.mubr.f32.gmra.mrb[0].mxu0 %v1213
      %v1328 = vpop.f32.mrb[0].mxu0
      %v1329 = vadd.f32 0.0, %v1328
      %v1330 = vpop.f32.mrb[0].mxu0
      %1331 = vmatprep.mubr.f32.mxu0 0.0
      %1332 = vmatmul.mubr.f32.gmra.mrb[0].mxu0 %v1216
      %v1333 = vpop.f32.mrb[0].mxu0
      %v1334 = vadd.f32 0.0, %v1333
      %v1335 = vpop.f32.mrb[0].mxu0
      %1336 = vmatprep.mubr.f32.mxu0 0.0
      %1337 = vmatmul.mubr.f32.gmra.mrb[0].mxu0 %v1219
      %v1338 = vpop.f32.mrb[0].mxu0
      %v1339 = vadd.f32 0.0, %v1338
      %v1340 = vpop.f32.mrb[0].mxu0
      %1341 = vmatprep.mubr.f32.mxu0 0.0
      %1342 = vmatmul.mubr.f32.gmra.mrb[0].mxu0 %v1222
      %v1343 = vpop.f32.mrb[0].mxu0
      %v1344 = vadd.f32 0.0, %v1343
      %v1345 = vpop.f32.mrb[0].mxu0
      %1346 = vmatprep.mubr.f32.mxu0 0.0
      %1347 = vmatmul.mubr.f32.gmra.mrb[0].mxu0 %v1225
      %v1348 = vpop.f32.mrb[0].mxu0
      %v1349 = vadd.f32 0.0, %v1348
      %v1350 = vpop.f32.mrb[0].mxu0
      %1351 = vdwg.mxu0
      %v1352 = vld [vmem:[%s8] sm:$0xff]
      %v1353 = vld [vmem:[%s8 + $0x8] sm:$0xff]
      %v1354 = vld [vmem:[%s8 + $0x10] sm:$0xff]
      %v1355 = vld [vmem:[%s8 + $0x18] sm:$0xff]
      %v1357 = vsel %vm864, %v1129, 0
      %v1360 = vsel %vm864, %v1134, 0
      %v1363 = vsel %vm864, %v1139, 0
      %v1366 = vsel %vm864, %v1144, 0
      %v1369 = vsel %vm864, %v1149, 0
      %v1372 = vsel %vm864, %v1154, 0
      %v1375 = vsel %vm864, %v1159, 0
      %v1378 = vsel %vm864, %v1164, 0
      %v1381 = vsel %vm864, %v1169, 0
      %v1384 = vsel %vm864, %v1174, 0
      %v1387 = vsel %vm864, %v1179, 0
      %v1390 = vsel %vm864, %v1184, 0
      %1392 = vmatprep.subr.mxu0 0.0
      %1393 = vmatpush1.msra.mxu0 %v1352
      %1394 = vmatprep.subr.mxu0 0.0
      %1395 = vmatpush1.msra.mxu0 %v1353
      %1396 = vmatprep.subr.mxu0 0.0
      %1397 = vmatpush1.msra.mxu0 %v1354
      %1398 = vmatprep.subr.mxu0 0.0
      %1399 = vmatpush1.msra.mxu0 %v1355
      %1400 = vmatprep.subr.mxu0 0.0
      %1401 = vmatpush1.msra.mxu0 0.0
      %1402 = vmatprep.subr.mxu0 0.0
      %1403 = vmatpush1.msra.mxu0 0.0
      %1404 = vmatprep.subr.mxu0 0.0
      %1405 = vmatpush1.msra.mxu0 0.0
      %1406 = vmatprep.subr.mxu0 0.0
      %1407 = vmatpush1.msra.mxu0 0.0
      %1408 = vmatprep.subr.mxu0 0.0
      %1409 = vmatpush1.msra.mxu0 0.0
      %1410 = vmatprep.subr.mxu0 0.0
      %1411 = vmatpush1.msra.mxu0 0.0
      %1412 = vmatprep.subr.mxu0 0.0
      %1413 = vmatpush1.msra.mxu0 0.0
      %1414 = vmatprep.subr.mxu0 0.0
      %1415 = vmatpush1.msra.mxu0 0.0
      %1416 = vmatprep.subr.mxu0 0.0
      %1417 = vmatpush1.msra.mxu0 0.0
      %1418 = vmatprep.subr.mxu0 0.0
      %1419 = vmatpush1.msra.mxu0 0.0
      %1420 = vmatprep.subr.mxu0 0.0
      %1421 = vmatpush1.msra.mxu0 0.0
      %1422 = vmatprep.subr.mxu0 0.0
      %1423 = vmatpush1.msra.mxu0 0.0
      %1424 = vmatprep.subr.mxu0 0.0
      %1425 = vmatpush1.msra.mxu0 0.0
      %1426 = vmatprep.subr.mxu0 0.0
      %1427 = vmatpush1.msra.mxu0 0.0
      %1428 = vmatprep.subr.mxu0 0.0
      %1429 = vmatpush1.msra.mxu0 0.0
      %1430 = vmatprep.subr.mxu0 0.0
      %1431 = vmatpush1.msra.mxu0 0.0
      %1432 = vmatprep.subr.mxu0 0.0
      %1433 = vmatpush1.msra.mxu0 0.0
      %1434 = vmatprep.subr.mxu0 0.0
      %1435 = vmatpush1.msra.mxu0 0.0
      %1436 = vmatprep.subr.mxu0 0.0
      %1437 = vmatpush1.msra.mxu0 0.0
      %1438 = vmatprep.subr.mxu0 0.0
      %1439 = vmatpush1.msra.mxu0 0.0
      %1440 = vmatprep.subr.mxu0 0.0
      %1441 = vmatpush1.msra.mxu0 0.0
      %1442 = vmatprep.subr.mxu0 0.0
      %1443 = vmatpush1.msra.mxu0 0.0
      %1444 = vmatprep.subr.mxu0 0.0
      %1445 = vmatpush1.msra.mxu0 0.0
      %1446 = vmatprep.subr.mxu0 0.0
      %1447 = vmatpush1.msra.mxu0 0.0
      %1448 = vmatprep.subr.mxu0 0.0
      %1449 = vmatpush1.msra.mxu0 0.0
      %1450 = vmatprep.subr.mxu0 0.0
      %1451 = vmatpush1.msra.mxu0 0.0
      %1452 = vmatprep.subr.mxu0 0.0
      %1453 = vmatpush1.msra.mxu0 0.0
      %1454 = vmatprep.subr.mxu0 0.0
      %1455 = vmatpush1.msra.mxu0 0.0
      %1456 = vmatprep.mubr.f32.mxu0 0.0
      %1457 = vmatmul.mubr.f32.gmra.mrb[0].mxu0 %v1357
      %v1458 = vpop.f32.mrb[0].mxu0
      %v1459 = vadd.f32 0.0, %v1458
      %v1460 = vpop.f32.mrb[0].mxu0
      %1461 = vmatprep.mubr.f32.mxu0 0.0
      %1462 = vmatmul.mubr.f32.gmra.mrb[0].mxu0 %v1360
      %v1463 = vpop.f32.mrb[0].mxu0
      %v1464 = vadd.f32 0.0, %v1463
      %v1465 = vpop.f32.mrb[0].mxu0
      %1466 = vmatprep.mubr.f32.mxu0 0.0
      %1467 = vmatmul.mubr.f32.gmra.mrb[0].mxu0 %v1363
      %v1468 = vpop.f32.mrb[0].mxu0
      %v1469 = vadd.f32 0.0, %v1468
      %v1470 = vpop.f32.mrb[0].mxu0
      %1471 = vmatprep.mubr.f32.mxu0 0.0
      %1472 = vmatmul.mubr.f32.gmra.mrb[0].mxu0 %v1366
      %v1473 = vpop.f32.mrb[0].mxu0
      %v1474 = vadd.f32 0.0, %v1473
      %v1475 = vpop.f32.mrb[0].mxu0
      %1476 = vmatprep.mubr.f32.mxu0 0.0
      %1477 = vmatmul.mubr.f32.gmra.mrb[0].mxu0 %v1369
      %v1478 = vpop.f32.mrb[0].mxu0
      %v1479 = vadd.f32 0.0, %v1478
      %v1480 = vpop.f32.mrb[0].mxu0
      %1481 = vmatprep.mubr.f32.mxu0 0.0
      %1482 = vmatmul.mubr.f32.gmra.mrb[0].mxu0 %v1372
      %v1483 = vpop.f32.mrb[0].mxu0
      %v1484 = vadd.f32 0.0, %v1483
      %v1485 = vpop.f32.mrb[0].mxu0
      %1486 = vmatprep.mubr.f32.mxu0 0.0
      %1487 = vmatmul.mubr.f32.gmra.mrb[0].mxu0 %v1375
      %v1488 = vpop.f32.mrb[0].mxu0
      %v1489 = vadd.f32 0.0, %v1488
      %v1490 = vpop.f32.mrb[0].mxu0
      %1491 = vmatprep.mubr.f32.mxu0 0.0
      %1492 = vmatmul.mubr.f32.gmra.mrb[0].mxu0 %v1378
      %v1493 = vpop.f32.mrb[0].mxu0
      %v1494 = vadd.f32 0.0, %v1493
      %v1495 = vpop.f32.mrb[0].mxu0
      %1496 = vmatprep.mubr.f32.mxu0 0.0
      %1497 = vmatmul.mubr.f32.gmra.mrb[0].mxu0 %v1381
      %v1498 = vpop.f32.mrb[0].mxu0
      %v1499 = vadd.f32 0.0, %v1498
      %v1500 = vpop.f32.mrb[0].mxu0
      %1501 = vmatprep.mubr.f32.mxu0 0.0
      %1502 = vmatmul.mubr.f32.gmra.mrb[0].mxu0 %v1384
      %v1503 = vpop.f32.mrb[0].mxu0
      %v1504 = vadd.f32 0.0, %v1503
      %v1505 = vpop.f32.mrb[0].mxu0
      %1506 = vmatprep.mubr.f32.mxu0 0.0
      %1507 = vmatmul.mubr.f32.gmra.mrb[0].mxu0 %v1387
      %v1508 = vpop.f32.mrb[0].mxu0
      %v1509 = vadd.f32 0.0, %v1508
      %v1510 = vpop.f32.mrb[0].mxu0
      %1511 = vmatprep.mubr.f32.mxu0 0.0
      %1512 = vmatmul.mubr.f32.gmra.mrb[0].mxu0 %v1390
      %v1513 = vpop.f32.mrb[0].mxu0
      %v1514 = vadd.f32 0.0, %v1513
      %v1515 = vpop.f32.mrb[0].mxu0
      %1516 = vdwg.mxu0
      %v1517 = vmul.f32 %v1294, %v1459
      %v1518 = vmul.f32 %v1299, %v1464
      %v1519 = vmul.f32 %v1304, %v1469
      %v1520 = vmul.f32 %v1309, %v1474
      %v1521 = vmul.f32 %v1314, %v1479
      %v1522 = vmul.f32 %v1319, %v1484
      %v1523 = vmul.f32 %v1324, %v1489
      %v1524 = vmul.f32 %v1329, %v1494
      %v1525 = vmul.f32 %v1334, %v1499
      %v1526 = vmul.f32 %v1339, %v1504
      %v1527 = vmul.f32 %v1344, %v1509
      %v1528 = vmul.f32 %v1349, %v1514
      %v1529 = vld [vmem:[%s9] sm:$0xff]
      %v1530 = vld [vmem:[%s9 + $0x8] sm:$0xff]
      %v1531 = vld [vmem:[%s9 + $0x10] sm:$0xff]
      %v1532 = vld [vmem:[%s9 + $0x18] sm:$0xff]
      %v1533 = vld [vmem:[%s672] sm:$0xff]
      %v1534 = vld [vmem:[%s672 + $0x8] sm:$0xff]
      %v1535 = vld [vmem:[%s672 + $0x10] sm:$0xff]
      %v1536 = vld [vmem:[%s672 + $0x18] sm:$0xff]
      %v1537 = vld [vmem:[%s672 + $0x20] sm:$0xff]
      %v1538 = vld [vmem:[%s672 + $0x28] sm:$0xff]
      %v1539 = vld [vmem:[%s672 + $0x30] sm:$0xff]
      %v1540 = vld [vmem:[%s672 + $0x38] sm:$0xff]
      %v1541 = vld [vmem:[%s672 + $0x40] sm:$0xff]
      %v1542 = vld [vmem:[%s672 + $0x48] sm:$0xff]
      %v1543 = vld [vmem:[%s672 + $0x50] sm:$0xff]
      %v1544 = vld [vmem:[%s672 + $0x58] sm:$0xff]
      %v1545 = vld [vmem:[%s10] sm:$0x1]
      %1547 = vset.pattern.permute.xlu0 0
      %1548 = vperm.xlu0 %1547, %v1533
      %v1549 = vpop.permute.xlu0 %1548
      %1552 = vset.pattern.permute.xlu0 0
      %1553 = vperm.xlu0 %1552, %v1534
      %v1554 = vpop.permute.xlu0 %1553
      %1557 = vset.pattern.permute.xlu0 0
      %1558 = vperm.xlu0 %1557, %v1535
      %v1559 = vpop.permute.xlu0 %1558
      %1562 = vset.pattern.permute.xlu0 0
      %1563 = vperm.xlu0 %1562, %v1536
      %v1564 = vpop.permute.xlu0 %1563
      %1567 = vset.pattern.permute.xlu0 0
      %1568 = vperm.xlu0 %1567, %v1537
      %v1569 = vpop.permute.xlu0 %1568
      %1572 = vset.pattern.permute.xlu0 0
      %1573 = vperm.xlu0 %1572, %v1538
      %v1574 = vpop.permute.xlu0 %1573
      %1577 = vset.pattern.permute.xlu0 0
      %1578 = vperm.xlu0 %1577, %v1539
      %v1579 = vpop.permute.xlu0 %1578
      %1582 = vset.pattern.permute.xlu0 0
      %1583 = vperm.xlu0 %1582, %v1540
      %v1584 = vpop.permute.xlu0 %1583
      %1587 = vset.pattern.permute.xlu0 0
      %1588 = vperm.xlu0 %1587, %v1541
      %v1589 = vpop.permute.xlu0 %1588
      %1592 = vset.pattern.permute.xlu0 0
      %1593 = vperm.xlu0 %1592, %v1542
      %v1594 = vpop.permute.xlu0 %1593
      %1597 = vset.pattern.permute.xlu0 0
      %1598 = vperm.xlu0 %1597, %v1543
      %v1599 = vpop.permute.xlu0 %1598
      %1602 = vset.pattern.permute.xlu0 0
      %1603 = vperm.xlu0 %1602, %v1544
      %v1604 = vpop.permute.xlu0 %1603
      %v1607 = vlaneseq
      %v1608 = vshrl.u32 %v1607, 7
      %v1609 = vsub.s32 0, %v1608
      %v1610 = vrot.slane %v1545, %v1609
      %v1612 = vmul.f32 %v1549, %v1610
      %v1613 = vmul.f32 %v1554, %v1610
      %v1614 = vmul.f32 %v1559, %v1610
      %v1615 = vmul.f32 %v1564, %v1610
      %v1616 = vmul.f32 %v1569, %v1610
      %v1617 = vmul.f32 %v1574, %v1610
      %v1618 = vmul.f32 %v1579, %v1610
      %v1619 = vmul.f32 %v1584, %v1610
      %v1620 = vmul.f32 %v1589, %v1610
      %v1621 = vmul.f32 %v1594, %v1610
      %v1622 = vmul.f32 %v1599, %v1610
      %v1623 = vmul.f32 %v1604, %v1610
      %v1625 = vsel %vm864, %v1517, 0
      %v1628 = vsel %vm864, %v1518, 0
      %v1631 = vsel %vm864, %v1519, 0
      %v1634 = vsel %vm864, %v1520, 0
      %v1637 = vsel %vm864, %v1521, 0
      %v1640 = vsel %vm864, %v1522, 0
      %v1643 = vsel %vm864, %v1523, 0
      %v1646 = vsel %vm864, %v1524, 0
      %v1649 = vsel %vm864, %v1525, 0
      %v1652 = vsel %vm864, %v1526, 0
      %v1655 = vsel %vm864, %v1527, 0
      %v1658 = vsel %vm864, %v1528, 0
      %1660 = vmatprep.subr.mxu0 0.0
      %1661 = vmatpush1.msra.mxu0 %v1529
      %1662 = vmatprep.subr.mxu0 0.0
      %1663 = vmatpush1.msra.mxu0 %v1530
      %1664 = vmatprep.subr.mxu0 0.0
      %1665 = vmatpush1.msra.mxu0 %v1531
      %1666 = vmatprep.subr.mxu0 0.0
      %1667 = vmatpush1.msra.mxu0 %v1532
      %1668 = vmatprep.subr.mxu0 0.0
      %1669 = vmatpush1.msra.mxu0 0.0
      %1670 = vmatprep.subr.mxu0 0.0
      %1671 = vmatpush1.msra.mxu0 0.0
      %1672 = vmatprep.subr.mxu0 0.0
      %1673 = vmatpush1.msra.mxu0 0.0
      %1674 = vmatprep.subr.mxu0 0.0
      %1675 = vmatpush1.msra.mxu0 0.0
      %1676 = vmatprep.subr.mxu0 0.0
      %1677 = vmatpush1.msra.mxu0 0.0
      %1678 = vmatprep.subr.mxu0 0.0
      %1679 = vmatpush1.msra.mxu0 0.0
      %1680 = vmatprep.subr.mxu0 0.0
      %1681 = vmatpush1.msra.mxu0 0.0
      %1682 = vmatprep.subr.mxu0 0.0
      %1683 = vmatpush1.msra.mxu0 0.0
      %1684 = vmatprep.subr.mxu0 0.0
      %1685 = vmatpush1.msra.mxu0 0.0
      %1686 = vmatprep.subr.mxu0 0.0
      %1687 = vmatpush1.msra.mxu0 0.0
      %1688 = vmatprep.subr.mxu0 0.0
      %1689 = vmatpush1.msra.mxu0 0.0
      %1690 = vmatprep.subr.mxu0 0.0
      %1691 = vmatpush1.msra.mxu0 0.0
      %1692 = vmatprep.subr.mxu0 0.0
      %1693 = vmatpush1.msra.mxu0 0.0
      %1694 = vmatprep.subr.mxu0 0.0
      %1695 = vmatpush1.msra.mxu0 0.0
      %1696 = vmatprep.subr.mxu0 0.0
      %1697 = vmatpush1.msra.mxu0 0.0
      %1698 = vmatprep.subr.mxu0 0.0
      %1699 = vmatpush1.msra.mxu0 0.0
      %1700 = vmatprep.subr.mxu0 0.0
      %1701 = vmatpush1.msra.mxu0 0.0
      %1702 = vmatprep.subr.mxu0 0.0
      %1703 = vmatpush1.msra.mxu0 0.0
      %1704 = vmatprep.subr.mxu0 0.0
      %1705 = vmatpush1.msra.mxu0 0.0
      %1706 = vmatprep.subr.mxu0 0.0
      %1707 = vmatpush1.msra.mxu0 0.0
      %1708 = vmatprep.subr.mxu0 0.0
      %1709 = vmatpush1.msra.mxu0 0.0
      %1710 = vmatprep.subr.mxu0 0.0
      %1711 = vmatpush1.msra.mxu0 0.0
      %1712 = vmatprep.subr.mxu0 0.0
      %1713 = vmatpush1.msra.mxu0 0.0
      %1714 = vmatprep.subr.mxu0 0.0
      %1715 = vmatpush1.msra.mxu0 0.0
      %1716 = vmatprep.subr.mxu0 0.0
      %1717 = vmatpush1.msra.mxu0 0.0
      %1718 = vmatprep.subr.mxu0 0.0
      %1719 = vmatpush1.msra.mxu0 0.0
      %1720 = vmatprep.subr.mxu0 0.0
      %1721 = vmatpush1.msra.mxu0 0.0
      %1722 = vmatprep.subr.mxu0 0.0
      %1723 = vmatpush1.msra.mxu0 0.0
      %1724 = vmatprep.mubr.f32.mxu0 0.0
      %1725 = vmatmul.mubr.f32.gmra.mrb[0].mxu0 %v1625
      %v1726 = vpop.f32.mrb[0].mxu0
      %v1727 = vadd.f32 %v1612, %v1726
      %v1728 = vpop.f32.mrb[0].mxu0
      %1729 = vmatprep.mubr.f32.mxu0 0.0
      %1730 = vmatmul.mubr.f32.gmra.mrb[0].mxu0 %v1628
      %v1731 = vpop.f32.mrb[0].mxu0
      %v1732 = vadd.f32 %v1613, %v1731
      %v1733 = vpop.f32.mrb[0].mxu0
      %1734 = vmatprep.mubr.f32.mxu0 0.0
      %1735 = vmatmul.mubr.f32.gmra.mrb[0].mxu0 %v1631
      %v1736 = vpop.f32.mrb[0].mxu0
      %v1737 = vadd.f32 %v1614, %v1736
      %v1738 = vpop.f32.mrb[0].mxu0
      %1739 = vmatprep.mubr.f32.mxu0 0.0
      %1740 = vmatmul.mubr.f32.gmra.mrb[0].mxu0 %v1634
      %v1741 = vpop.f32.mrb[0].mxu0
      %v1742 = vadd.f32 %v1615, %v1741
      %v1743 = vpop.f32.mrb[0].mxu0
      %1744 = vmatprep.mubr.f32.mxu0 0.0
      %1745 = vmatmul.mubr.f32.gmra.mrb[0].mxu0 %v1637
      %v1746 = vpop.f32.mrb[0].mxu0
      %v1747 = vadd.f32 %v1616, %v1746
      %v1748 = vpop.f32.mrb[0].mxu0
      %1749 = vmatprep.mubr.f32.mxu0 0.0
      %1750 = vmatmul.mubr.f32.gmra.mrb[0].mxu0 %v1640
      %v1751 = vpop.f32.mrb[0].mxu0
      %v1752 = vadd.f32 %v1617, %v1751
      %v1753 = vpop.f32.mrb[0].mxu0
      %1754 = vmatprep.mubr.f32.mxu0 0.0
      %1755 = vmatmul.mubr.f32.gmra.mrb[0].mxu0 %v1643
      %v1756 = vpop.f32.mrb[0].mxu0
      %v1757 = vadd.f32 %v1618, %v1756
      %v1758 = vpop.f32.mrb[0].mxu0
      %1759 = vmatprep.mubr.f32.mxu0 0.0
      %1760 = vmatmul.mubr.f32.gmra.mrb[0].mxu0 %v1646
      %v1761 = vpop.f32.mrb[0].mxu0
      %v1762 = vadd.f32 %v1619, %v1761
      %v1763 = vpop.f32.mrb[0].mxu0
      %1764 = vmatprep.mubr.f32.mxu0 0.0
      %1765 = vmatmul.mubr.f32.gmra.mrb[0].mxu0 %v1649
      %v1766 = vpop.f32.mrb[0].mxu0
      %v1767 = vadd.f32 %v1620, %v1766
      %v1768 = vpop.f32.mrb[0].mxu0
      %1769 = vmatprep.mubr.f32.mxu0 0.0
      %1770 = vmatmul.mubr.f32.gmra.mrb[0].mxu0 %v1652
      %v1771 = vpop.f32.mrb[0].mxu0
      %v1772 = vadd.f32 %v1621, %v1771
      %v1773 = vpop.f32.mrb[0].mxu0
      %1774 = vmatprep.mubr.f32.mxu0 0.0
      %1775 = vmatmul.mubr.f32.gmra.mrb[0].mxu0 %v1655
      %v1776 = vpop.f32.mrb[0].mxu0
      %v1777 = vadd.f32 %v1622, %v1776
      %v1778 = vpop.f32.mrb[0].mxu0
      %1779 = vmatprep.mubr.f32.mxu0 0.0
      %1780 = vmatmul.mubr.f32.gmra.mrb[0].mxu0 %v1658
      %v1781 = vpop.f32.mrb[0].mxu0
      %v1782 = vadd.f32 %v1623, %v1781
      %v1783 = vpop.f32.mrb[0].mxu0
      %1784 = vdwg.mxu0
      %v1785 = vld [vmem:[%s11] sm:$0x1]
      %v1787 = vlaneseq
      %v1788 = vshrl.u32 %v1787, 7
      %v1789 = vsub.s32 0, %v1788
      %v1790 = vrot.slane %v1785, %v1789
      %v1792 = vadd.f32 %v1727, %v1790
      %v1793 = vadd.f32 %v1732, %v1790
      %v1794 = vadd.f32 %v1737, %v1790
      %v1795 = vadd.f32 %v1742, %v1790
      %v1796 = vadd.f32 %v1747, %v1790
      %v1797 = vadd.f32 %v1752, %v1790
      %v1798 = vadd.f32 %v1757, %v1790
      %v1799 = vadd.f32 %v1762, %v1790
      %v1800 = vadd.f32 %v1767, %v1790
      %v1801 = vadd.f32 %v1772, %v1790
      %v1802 = vadd.f32 %v1777, %v1790
      %v1803 = vadd.f32 %v1782, %v1790
      %v1804 = vmax.f32 %v1792, 0.0
      %v1805 = vmax.f32 %v1793, 0.0
      %v1806 = vmax.f32 %v1794, 0.0
      %v1807 = vmax.f32 %v1795, 0.0
      %v1808 = vmax.f32 %v1796, 0.0
      %v1809 = vmax.f32 %v1797, 0.0
      %v1810 = vmax.f32 %v1798, 0.0
      %v1811 = vmax.f32 %v1799, 0.0
      %v1812 = vmax.f32 %v1800, 0.0
      %v1813 = vmax.f32 %v1801, 0.0
      %v1814 = vmax.f32 %v1802, 0.0
      %v1815 = vmax.f32 %v1803, 0.0
      %v1816 = vld [vmem:[%s12] sm:$0x1]
      %v1818 = vlaneseq
      %v1819 = vshrl.u32 %v1818, 7
      %v1820 = vsub.s32 0, %v1819
      %v1821 = vrot.slane %v1816, %v1820
      %v1823 = vmul.f32 %v1804, %v1821
      %v1824 = vmul.f32 %v1805, %v1821
      %v1825 = vmul.f32 %v1806, %v1821
      %v1826 = vmul.f32 %v1807, %v1821
      %v1827 = vmul.f32 %v1808, %v1821
      %v1828 = vmul.f32 %v1809, %v1821
      %v1829 = vmul.f32 %v1810, %v1821
      %v1830 = vmul.f32 %v1811, %v1821
      %v1831 = vmul.f32 %v1812, %v1821
      %v1832 = vmul.f32 %v1813, %v1821
      %v1833 = vmul.f32 %v1814, %v1821
      %v1834 = vmul.f32 %v1815, %v1821
      %vm1835 = vcmask 523264
      %v1836 = vsel %vm1835, %v1823, 0.0
      %1837 = vadd.xlane.f32.xlu0 %v1836
      %v1838 = vpop.xlane.xlu0 %1837
      %v1839 = vsel %vm1835, %v1824, 0.0
      %1840 = vadd.xlane.f32.xlu0 %v1839
      %v1841 = vpop.xlane.xlu0 %1840
      %v1842 = vsel %vm1835, %v1825, 0.0
      %1843 = vadd.xlane.f32.xlu0 %v1842
      %v1844 = vpop.xlane.xlu0 %1843
      %v1845 = vsel %vm1835, %v1826, 0.0
      %1846 = vadd.xlane.f32.xlu0 %v1845
      %v1847 = vpop.xlane.xlu0 %1846
      %v1848 = vsel %vm1835, %v1827, 0.0
      %1849 = vadd.xlane.f32.xlu0 %v1848
      %v1850 = vpop.xlane.xlu0 %1849
      %v1851 = vsel %vm1835, %v1828, 0.0
      %1852 = vadd.xlane.f32.xlu0 %v1851
      %v1853 = vpop.xlane.xlu0 %1852
      %v1854 = vsel %vm1835, %v1829, 0.0
      %1855 = vadd.xlane.f32.xlu0 %v1854
      %v1856 = vpop.xlane.xlu0 %1855
      %v1857 = vsel %vm1835, %v1830, 0.0
      %1858 = vadd.xlane.f32.xlu0 %v1857
      %v1859 = vpop.xlane.xlu0 %1858
      %v1860 = vsel %vm1835, %v1831, 0.0
      %1861 = vadd.xlane.f32.xlu0 %v1860
      %v1862 = vpop.xlane.xlu0 %1861
      %v1863 = vsel %vm1835, %v1832, 0.0
      %1864 = vadd.xlane.f32.xlu0 %v1863
      %v1865 = vpop.xlane.xlu0 %1864
      %v1866 = vsel %vm1835, %v1833, 0.0
      %1867 = vadd.xlane.f32.xlu0 %v1866
      %v1868 = vpop.xlane.xlu0 %1867
      %v1869 = vsel %vm1835, %v1834, 0.0
      %1870 = vadd.xlane.f32.xlu0 %v1869
      %v1871 = vpop.xlane.xlu0 %1870
      %v1872 = vld [vmem:[#allocation3] sm:$0x1]
      %v1874 = vlaneseq
      %v1875 = vshrl.u32 %v1874, 7
      %v1876 = vsub.s32 0, %v1875
      %v1877 = vrot.slane %v1872, %v1876
      %v1879 = vadd.f32 %v1838, %v1877
      %v1880 = vadd.f32 %v1841, %v1877
      %v1881 = vadd.f32 %v1844, %v1877
      %v1882 = vadd.f32 %v1847, %v1877
      %v1883 = vadd.f32 %v1850, %v1877
      %v1884 = vadd.f32 %v1853, %v1877
      %v1885 = vadd.f32 %v1856, %v1877
      %v1886 = vadd.f32 %v1859, %v1877
      %v1887 = vadd.f32 %v1862, %v1877
      %v1888 = vadd.f32 %v1865, %v1877
      %v1889 = vadd.f32 %v1868, %v1877
      %v1890 = vadd.f32 %v1871, %v1877
      %v1891 = vld [vmem:[%s678] sm:$0xff]
      %v1892 = vld [vmem:[%s678 + $0x8] sm:$0xff]
      %v1893 = vld [vmem:[%s678 + $0x10] sm:$0xff]
      %v1894 = vld [vmem:[%s678 + $0x18] sm:$0xff]
      %v1895 = vld [vmem:[%s678 + $0x20] sm:$0xff]
      %v1896 = vld [vmem:[%s678 + $0x28] sm:$0xff]
      %v1897 = vld [vmem:[%s678 + $0x30] sm:$0xff]
      %v1898 = vld [vmem:[%s678 + $0x38] sm:$0xff]
      %v1899 = vld [vmem:[%s678 + $0x40] sm:$0xff]
      %v1900 = vld [vmem:[%s678 + $0x48] sm:$0xff]
      %v1901 = vld [vmem:[%s678 + $0x50] sm:$0xff]
      %v1902 = vld [vmem:[%s678 + $0x58] sm:$0xff]
      %v1903 = vmul.f32 %v1879, %v1891
      %v1904 = vmul.f32 %v1880, %v1892
      %v1905 = vmul.f32 %v1881, %v1893
      %v1906 = vmul.f32 %v1882, %v1894
      %v1907 = vmul.f32 %v1883, %v1895
      %v1908 = vmul.f32 %v1884, %v1896
      %v1909 = vmul.f32 %v1885, %v1897
      %v1910 = vmul.f32 %v1886, %v1898
      %v1911 = vmul.f32 %v1887, %v1899
      %v1912 = vmul.f32 %v1888, %v1900
      %v1913 = vmul.f32 %v1889, %v1901
      %v1914 = vmul.f32 %v1890, %v1902
      %1916 = vset.pattern.permute.xlu0 0
      %1917 = vperm.xlu0 %1916, %v1903
      %v1918 = vpop.permute.xlu0 %1917
      %1921 = vset.pattern.permute.xlu0 0
      %1922 = vperm.xlu0 %1921, %v1904
      %v1923 = vpop.permute.xlu0 %1922
      %1926 = vset.pattern.permute.xlu0 0
      %1927 = vperm.xlu0 %1926, %v1905
      %v1928 = vpop.permute.xlu0 %1927
      %1931 = vset.pattern.permute.xlu0 0
      %1932 = vperm.xlu0 %1931, %v1906
      %v1933 = vpop.permute.xlu0 %1932
      %1936 = vset.pattern.permute.xlu0 0
      %1937 = vperm.xlu0 %1936, %v1907
      %v1938 = vpop.permute.xlu0 %1937
      %1941 = vset.pattern.permute.xlu0 0
      %1942 = vperm.xlu0 %1941, %v1908
      %v1943 = vpop.permute.xlu0 %1942
      %1946 = vset.pattern.permute.xlu0 0
      %1947 = vperm.xlu0 %1946, %v1909
      %v1948 = vpop.permute.xlu0 %1947
      %1951 = vset.pattern.permute.xlu0 0
      %1952 = vperm.xlu0 %1951, %v1910
      %v1953 = vpop.permute.xlu0 %1952
      %1956 = vset.pattern.permute.xlu0 0
      %1957 = vperm.xlu0 %1956, %v1911
      %v1958 = vpop.permute.xlu0 %1957
      %1961 = vset.pattern.permute.xlu0 0
      %1962 = vperm.xlu0 %1961, %v1912
      %v1963 = vpop.permute.xlu0 %1962
      %1966 = vset.pattern.permute.xlu0 0
      %1967 = vperm.xlu0 %1966, %v1913
      %v1968 = vpop.permute.xlu0 %1967
      %1971 = vset.pattern.permute.xlu0 0
      %1972 = vperm.xlu0 %1971, %v1914
      %v1973 = vpop.permute.xlu0 %1972
      %v1975 = vmul.f32 %v834, %v1918
      %v1976 = vmul.f32 %v835, %v1923
      %v1977 = vmul.f32 %v836, %v1928
      %v1978 = vmul.f32 %v837, %v1933
      %v1979 = vmul.f32 %v838, %v1938
      %v1980 = vmul.f32 %v839, %v1943
      %v1981 = vmul.f32 %v840, %v1948
      %v1982 = vmul.f32 %v841, %v1953
      %v1983 = vmul.f32 %v842, %v1958
      %v1984 = vmul.f32 %v843, %v1963
      %v1985 = vmul.f32 %v844, %v1968
      %v1986 = vmul.f32 %v845, %v1973
      %vm1987 = vcmask 785408
      %v1989 = vsel %vm1987, %v860, 0
      %v1992 = vsel %vm1987, %v861, 0
      %v1995 = vsel %vm1987, %v862, 0
      %v1998 = vsel %vm1987, %v863, 0
      %2000 = vmatprep.subr.mxu0 0.0
      %2001 = vmatpush1.msra.mxu0 %v1975
      %2002 = vmatprep.subr.mxu0 0.0
      %2003 = vmatpush1.msra.mxu0 %v1976
      %2004 = vmatprep.subr.mxu0 0.0
      %2005 = vmatpush1.msra.mxu0 %v1977
      %2006 = vmatprep.subr.mxu0 0.0
      %2007 = vmatpush1.msra.mxu0 %v1978
      %2008 = vmatprep.subr.mxu0 0.0
      %2009 = vmatpush1.msra.mxu0 %v1979
      %2010 = vmatprep.subr.mxu0 0.0
      %2011 = vmatpush1.msra.mxu0 %v1980
      %2012 = vmatprep.subr.mxu0 0.0
      %2013 = vmatpush1.msra.mxu0 %v1981
      %2014 = vmatprep.subr.mxu0 0.0
      %2015 = vmatpush1.msra.mxu0 %v1982
      %2016 = vmatprep.subr.mxu0 0.0
      %2017 = vmatpush1.msra.mxu0 %v1983
      %2018 = vmatprep.subr.mxu0 0.0
      %2019 = vmatpush1.msra.mxu0 %v1984
      %2020 = vmatprep.subr.mxu0 0.0
      %2021 = vmatpush1.msra.mxu0 %v1985
      %2022 = vmatprep.subr.mxu0 0.0
      %2023 = vmatpush1.msra.mxu0 %v1986
      %2024 = vmatprep.subr.mxu0 0.0
      %2025 = vmatpush1.msra.mxu0 0.0
      %2026 = vmatprep.subr.mxu0 0.0
      %2027 = vmatpush1.msra.mxu0 0.0
      %2028 = vmatprep.subr.mxu0 0.0
      %2029 = vmatpush1.msra.mxu0 0.0
      %2030 = vmatprep.subr.mxu0 0.0
      %2031 = vmatpush1.msra.mxu0 0.0
      %2032 = vmatprep.subr.mxu0 0.0
      %2033 = vmatpush1.msra.mxu0 0.0
      %2034 = vmatprep.subr.mxu0 0.0
      %2035 = vmatpush1.msra.mxu0 0.0
      %2036 = vmatprep.subr.mxu0 0.0
      %2037 = vmatpush1.msra.mxu0 0.0
      %2038 = vmatprep.subr.mxu0 0.0
      %2039 = vmatpush1.msra.mxu0 0.0
      %2040 = vmatprep.subr.mxu0 0.0
      %2041 = vmatpush1.msra.mxu0 0.0
      %2042 = vmatprep.subr.mxu0 0.0
      %2043 = vmatpush1.msra.mxu0 0.0
      %2044 = vmatprep.subr.mxu0 0.0
      %2045 = vmatpush1.msra.mxu0 0.0
      %2046 = vmatprep.subr.mxu0 0.0
      %2047 = vmatpush1.msra.mxu0 0.0
      %2048 = vmatprep.subr.mxu0 0.0
      %2049 = vmatpush1.msra.mxu0 0.0
      %2050 = vmatprep.subr.mxu0 0.0
      %2051 = vmatpush1.msra.mxu0 0.0
      %2052 = vmatprep.subr.mxu0 0.0
      %2053 = vmatpush1.msra.mxu0 0.0
      %2054 = vmatprep.subr.mxu0 0.0
      %2055 = vmatpush1.msra.mxu0 0.0
      %2056 = vmatprep.subr.mxu0 0.0
      %2057 = vmatpush1.msra.mxu0 0.0
      %2058 = vmatprep.subr.mxu0 0.0
      %2059 = vmatpush1.msra.mxu0 0.0
      %2060 = vmatprep.subr.mxu0 0.0
      %2061 = vmatpush1.msra.mxu0 0.0
      %2062 = vmatprep.subr.mxu0 0.0
      %2063 = vmatpush1.msra.mxu0 0.0
      %2064 = vmatprep.mubr.f32.mxu0 0.0
      %2065 = vmatmul.mubr.f32.gmra.mrb[0].mxu0 %v1989
      %v2066 = vpop.f32.mrb[0].mxu0
      %v2067 = vadd.f32 0.0, %v2066
      %v2068 = vpop.f32.mrb[0].mxu0
      %2069 = vmatprep.mubr.f32.mxu0 0.0
      %2070 = vmatmul.mubr.f32.gmra.mrb[0].mxu0 %v1992
      %v2071 = vpop.f32.mrb[0].mxu0
      %v2072 = vadd.f32 0.0, %v2071
      %v2073 = vpop.f32.mrb[0].mxu0
      %2074 = vmatprep.mubr.f32.mxu0 0.0
      %2075 = vmatmul.mubr.f32.gmra.mrb[0].mxu0 %v1995
      %v2076 = vpop.f32.mrb[0].mxu0
      %v2077 = vadd.f32 0.0, %v2076
      %v2078 = vpop.f32.mrb[0].mxu0
      %2079 = vmatprep.mubr.f32.mxu0 0.0
      %2080 = vmatmul.mubr.f32.gmra.mrb[0].mxu0 %v1998
      %v2081 = vpop.f32.mrb[0].mxu0
      %v2082 = vadd.f32 0.0, %v2081
      %v2083 = vpop.f32.mrb[0].mxu0
      %2084 = vdwg.mxu0
      %vm2085 = vcmp.ne.f32.partialorder %v2067, 0.0
      %vm2086 = vcmp.ne.f32.partialorder %v2072, 0.0
      %vm2087 = vcmp.ne.f32.partialorder %v2077, 0.0
      %vm2088 = vcmp.ne.f32.partialorder %v2082, 0.0
      %v2089 = vsel %vm2085, %v2067, -9e+15
      %v2090 = vsel %vm2086, %v2072, -9e+15
      %v2091 = vsel %vm2087, %v2077, -9e+15
      %v2092 = vsel %vm2088, %v2082, -9e+15
      %vm2093 = vcmp.eq.s32.totalorder %v847, %v701
      %vm2094 = vcmp.eq.s32.totalorder %v848, %v701
      %vm2095 = vcmp.eq.s32.totalorder %v849, %v701
      %vm2096 = vcmp.eq.s32.totalorder %v850, %v701
      %v2097 = vsel %vm2093, -9e+15, %v2089
      %v2098 = vsel %vm2094, -9e+15, %v2090
      %v2099 = vsel %vm2095, -9e+15, %v2091
      %v2100 = vsel %vm2096, -9e+15, %v2092
      %v2101 = vsel %vm864, %v2097, -inf
      %2102 = vmax.xlane.f32.xlu0 %v2101
      %v2103 = vpop.xlane.xlu0 %2102
      %v2104 = vsel %vm864, %v2098, -inf
      %2105 = vmax.xlane.f32.xlu0 %v2104
      %v2106 = vpop.xlane.xlu0 %2105
      %v2107 = vsel %vm864, %v2099, -inf
      %2108 = vmax.xlane.f32.xlu0 %v2107
      %v2109 = vpop.xlane.xlu0 %2108
      %v2110 = vsel %vm864, %v2100, -inf
      %2111 = vmax.xlane.f32.xlu0 %v2110
      %v2112 = vpop.xlane.xlu0 %2111
      %v2113 = vsub.f32 %v2097, %v2103
      %v2114 = vsub.f32 %v2098, %v2106
      %v2115 = vsub.f32 %v2099, %v2109
      %v2116 = vsub.f32 %v2100, %v2112
      %v2117 = vmul.f32 %v2113, 1.442695
      %v2118 = vpow.pop %v2117
      %v2119 = vmul.f32 %v2114, 1.442695
      %v2120 = vpow.pop %v2119
      %v2121 = vmul.f32 %v2115, 1.442695
      %v2122 = vpow.pop %v2121
      %v2123 = vmul.f32 %v2116, 1.442695
      %v2124 = vpow.pop %v2123
      %v2125 = vsel %vm864, %v2118, 0.0
      %2126 = vadd.xlane.f32.xlu0 %v2125
      %v2127 = vpop.xlane.xlu0 %2126
      %v2128 = vsel %vm864, %v2120, 0.0
      %2129 = vadd.xlane.f32.xlu0 %v2128
      %v2130 = vpop.xlane.xlu0 %2129
      %v2131 = vsel %vm864, %v2122, 0.0
      %2132 = vadd.xlane.f32.xlu0 %v2131
      %v2133 = vpop.xlane.xlu0 %2132
      %v2134 = vsel %vm864, %v2124, 0.0
      %2135 = vadd.xlane.f32.xlu0 %v2134
      %v2136 = vpop.xlane.xlu0 %2135
      %v2137 = vrcp.pop %v2127
      %v2138 = vmul.f32 %v2118, %v2137
      %v2139 = vrcp.pop %v2130
      %v2140 = vmul.f32 %v2120, %v2139
      %v2141 = vrcp.pop %v2133
      %v2142 = vmul.f32 %v2122, %v2141
      %v2143 = vrcp.pop %v2136
      %v2144 = vmul.f32 %v2124, %v2143
      %v2146 = vsel %vm864, %v2138, 0
      %v2149 = vsel %vm864, %v2140, 0
      %v2152 = vsel %vm864, %v2142, 0
      %v2155 = vsel %vm864, %v2144, 0
      %2157 = vmatprep.subr.mxu0 0.0
      %2158 = vmatpush1.msra.mxu0 %v692
      %2159 = vmatprep.subr.mxu0 0.0
      %2160 = vmatpush1.msra.mxu0 %v693
      %2161 = vmatprep.subr.mxu0 0.0
      %2162 = vmatpush1.msra.mxu0 %v694
      %2163 = vmatprep.subr.mxu0 0.0
      %2164 = vmatpush1.msra.mxu0 %v695
      %2165 = vmatprep.subr.mxu0 0.0
      %2166 = vmatpush1.msra.mxu0 0.0
      %2167 = vmatprep.subr.mxu0 0.0
      %2168 = vmatpush1.msra.mxu0 0.0
      %2169 = vmatprep.subr.mxu0 0.0
      %2170 = vmatpush1.msra.mxu0 0.0
      %2171 = vmatprep.subr.mxu0 0.0
      %2172 = vmatpush1.msra.mxu0 0.0
      %2173 = vmatprep.subr.mxu0 0.0
      %2174 = vmatpush1.msra.mxu0 0.0
      %2175 = vmatprep.subr.mxu0 0.0
      %2176 = vmatpush1.msra.mxu0 0.0
      %2177 = vmatprep.subr.mxu0 0.0
      %2178 = vmatpush1.msra.mxu0 0.0
      %2179 = vmatprep.subr.mxu0 0.0
      %2180 = vmatpush1.msra.mxu0 0.0
      %2181 = vmatprep.subr.mxu0 0.0
      %2182 = vmatpush1.msra.mxu0 0.0
      %2183 = vmatprep.subr.mxu0 0.0
      %2184 = vmatpush1.msra.mxu0 0.0
      %2185 = vmatprep.subr.mxu0 0.0
      %2186 = vmatpush1.msra.mxu0 0.0
      %2187 = vmatprep.subr.mxu0 0.0
      %2188 = vmatpush1.msra.mxu0 0.0
      %2189 = vmatprep.subr.mxu0 0.0
      %2190 = vmatpush1.msra.mxu0 0.0
      %2191 = vmatprep.subr.mxu0 0.0
      %2192 = vmatpush1.msra.mxu0 0.0
      %2193 = vmatprep.subr.mxu0 0.0
      %2194 = vmatpush1.msra.mxu0 0.0
      %2195 = vmatprep.subr.mxu0 0.0
      %2196 = vmatpush1.msra.mxu0 0.0
      %2197 = vmatprep.subr.mxu0 0.0
      %2198 = vmatpush1.msra.mxu0 0.0
      %2199 = vmatprep.subr.mxu0 0.0
      %2200 = vmatpush1.msra.mxu0 0.0
      %2201 = vmatprep.subr.mxu0 0.0
      %2202 = vmatpush1.msra.mxu0 0.0
      %2203 = vmatprep.subr.mxu0 0.0
      %2204 = vmatpush1.msra.mxu0 0.0
      %2205 = vmatprep.subr.mxu0 0.0
      %2206 = vmatpush1.msra.mxu0 0.0
      %2207 = vmatprep.subr.mxu0 0.0
      %2208 = vmatpush1.msra.mxu0 0.0
      %2209 = vmatprep.subr.mxu0 0.0
      %2210 = vmatpush1.msra.mxu0 0.0
      %2211 = vmatprep.subr.mxu0 0.0
      %2212 = vmatpush1.msra.mxu0 0.0
      %2213 = vmatprep.subr.mxu0 0.0
      %2214 = vmatpush1.msra.mxu0 0.0
      %2215 = vmatprep.subr.mxu0 0.0
      %2216 = vmatpush1.msra.mxu0 0.0
      %2217 = vmatprep.subr.mxu0 0.0
      %2218 = vmatpush1.msra.mxu0 0.0
      %2219 = vmatprep.subr.mxu0 0.0
      %2220 = vmatpush1.msra.mxu0 0.0
      %2221 = vmatprep.mubr.f32.mxu0 0.0
      %2222 = vmatmul.mubr.f32.gmra.mrb[0].mxu0 %v2146
      %v2223 = vpop.f32.mrb[0].mxu0
      %v2224 = vadd.f32 0.0, %v2223
      %v2225 = vpop.f32.mrb[0].mxu0
      %2226 = vmatprep.mubr.f32.mxu0 0.0
      %2227 = vmatmul.mubr.f32.gmra.mrb[0].mxu0 %v2149
      %v2228 = vpop.f32.mrb[0].mxu0
      %v2229 = vadd.f32 0.0, %v2228
      %v2230 = vpop.f32.mrb[0].mxu0
      %2231 = vmatprep.mubr.f32.mxu0 0.0
      %2232 = vmatmul.mubr.f32.gmra.mrb[0].mxu0 %v2152
      %v2233 = vpop.f32.mrb[0].mxu0
      %v2234 = vadd.f32 0.0, %v2233
      %v2235 = vpop.f32.mrb[0].mxu0
      %2236 = vmatprep.mubr.f32.mxu0 0.0
      %2237 = vmatmul.mubr.f32.gmra.mrb[0].mxu0 %v2155
      %v2238 = vpop.f32.mrb[0].mxu0
      %v2239 = vadd.f32 0.0, %v2238
      %v2240 = vpop.f32.mrb[0].mxu0
      %2241 = vdwg.mxu0
      %2242 = vst.msk [vmem:[#allocation2] sm:$0xff] %vm864, %v2224
      %2243 = vst.msk [vmem:[#allocation2 + $0x8] sm:$0xff] %vm864, %v2229
      %2244 = vst.msk [vmem:[#allocation2 + $0x10] sm:$0xff] %vm864, %v2234
      %2245 = vst.msk [vmem:[#allocation2 + $0x18] sm:$0xff] %vm864, %v2239
      %2250 = vrot.lane.b32.xlu0 %v696, 32
      %v2251 = vpop.permute.xlu0 %2250
      %2252 = vrot.lane.b32.xlu0 %v697, 32
      %v2253 = vpop.permute.xlu0 %2252
      %2254 = vrot.lane.b32.xlu0 %v698, 32
      %v2255 = vpop.permute.xlu0 %2254
      %2256 = vrot.lane.b32.xlu0 %v699, 32
      %v2257 = vpop.permute.xlu0 %2256
      %vm2262 = vcmask 523520
      %2263 = vst.msk [vmem:[#allocation2] sm:$0xff] %vm2262, %v2251
      %2264 = vst.msk [vmem:[#allocation2 + $0x8] sm:$0xff] %vm2262, %v2253
      %2265 = vst.msk [vmem:[#allocation2 + $0x10] sm:$0xff] %vm2262, %v2255
      %2266 = vst.msk [vmem:[#allocation2 + $0x18] sm:$0xff] %vm2262, %v2257
      %v2267 = vld [vmem:[#allocation2] sm:$0xff]
      %v2268 = vld [vmem:[#allocation2 + $0x8] sm:$0xff]
      %v2269 = vld [vmem:[#allocation2 + $0x10] sm:$0xff]
      %v2270 = vld [vmem:[#allocation2 + $0x18] sm:$0xff]
      %v2271 = vld [vmem:[%s14] sm:$0xff]
      %v2272 = vld [vmem:[%s14 + $0x8] sm:$0xff]
      %v2273 = vld [vmem:[%s14 + $0x10] sm:$0xff]
      %v2274 = vld [vmem:[%s14 + $0x18] sm:$0xff]
      %v2275 = vld [vmem:[%s14 + $0x20] sm:$0xff]
      %v2276 = vld [vmem:[%s14 + $0x28] sm:$0xff]
      %v2277 = vld [vmem:[%s14 + $0x30] sm:$0xff]
      %v2278 = vld [vmem:[%s14 + $0x38] sm:$0xff]
      %v2279 = vld [vmem:[%s15] sm:$0x1]
      %v2281 = vlaneseq
      %v2282 = vshrl.u32 %v2281, 7
      %v2283 = vsub.s32 0, %v2282
      %v2284 = vrot.slane %v2279, %v2283
      %v2287 = vsel %vm1835, %v2267, 0
      %v2290 = vsel %vm1835, %v2268, 0
      %v2293 = vsel %vm1835, %v2269, 0
      %v2296 = vsel %vm1835, %v2270, 0
      %2298 = vmatprep.subr.mxu0 0.0
      %2299 = vmatpush1.msra.mxu0 %v2271
      %2300 = vmatprep.subr.mxu0 0.0
      %2301 = vmatpush1.msra.mxu0 %v2272
      %2302 = vmatprep.subr.mxu0 0.0
      %2303 = vmatpush1.msra.mxu0 %v2273
      %2304 = vmatprep.subr.mxu0 0.0
      %2305 = vmatpush1.msra.mxu0 %v2274
      %2306 = vmatprep.subr.mxu0 0.0
      %2307 = vmatpush1.msra.mxu0 %v2275
      %2308 = vmatprep.subr.mxu0 0.0
      %2309 = vmatpush1.msra.mxu0 %v2276
      %2310 = vmatprep.subr.mxu0 0.0
      %2311 = vmatpush1.msra.mxu0 %v2277
      %2312 = vmatprep.subr.mxu0 0.0
      %2313 = vmatpush1.msra.mxu0 %v2278
      %2314 = vmatprep.subr.mxu0 0.0
      %2315 = vmatpush1.msra.mxu0 0.0
      %2316 = vmatprep.subr.mxu0 0.0
      %2317 = vmatpush1.msra.mxu0 0.0
      %2318 = vmatprep.subr.mxu0 0.0
      %2319 = vmatpush1.msra.mxu0 0.0
      %2320 = vmatprep.subr.mxu0 0.0
      %2321 = vmatpush1.msra.mxu0 0.0
      %2322 = vmatprep.subr.mxu0 0.0
      %2323 = vmatpush1.msra.mxu0 0.0
      %2324 = vmatprep.subr.mxu0 0.0
      %2325 = vmatpush1.msra.mxu0 0.0
      %2326 = vmatprep.subr.mxu0 0.0
      %2327 = vmatpush1.msra.mxu0 0.0
      %2328 = vmatprep.subr.mxu0 0.0
      %2329 = vmatpush1.msra.mxu0 0.0
      %2330 = vmatprep.subr.mxu0 0.0
      %2331 = vmatpush1.msra.mxu0 0.0
      %2332 = vmatprep.subr.mxu0 0.0
      %2333 = vmatpush1.msra.mxu0 0.0
      %2334 = vmatprep.subr.mxu0 0.0
      %2335 = vmatpush1.msra.mxu0 0.0
      %2336 = vmatprep.subr.mxu0 0.0
      %2337 = vmatpush1.msra.mxu0 0.0
      %2338 = vmatprep.subr.mxu0 0.0
      %2339 = vmatpush1.msra.mxu0 0.0
      %2340 = vmatprep.subr.mxu0 0.0
      %2341 = vmatpush1.msra.mxu0 0.0
      %2342 = vmatprep.subr.mxu0 0.0
      %2343 = vmatpush1.msra.mxu0 0.0
      %2344 = vmatprep.subr.mxu0 0.0
      %2345 = vmatpush1.msra.mxu0 0.0
      %2346 = vmatprep.subr.mxu0 0.0
      %2347 = vmatpush1.msra.mxu0 0.0
      %2348 = vmatprep.subr.mxu0 0.0
      %2349 = vmatpush1.msra.mxu0 0.0
      %2350 = vmatprep.subr.mxu0 0.0
      %2351 = vmatpush1.msra.mxu0 0.0
      %2352 = vmatprep.subr.mxu0 0.0
      %2353 = vmatpush1.msra.mxu0 0.0
      %2354 = vmatprep.subr.mxu0 0.0
      %2355 = vmatpush1.msra.mxu0 0.0
      %2356 = vmatprep.subr.mxu0 0.0
      %2357 = vmatpush1.msra.mxu0 0.0
      %2358 = vmatprep.subr.mxu0 0.0
      %2359 = vmatpush1.msra.mxu0 0.0
      %2360 = vmatprep.subr.mxu0 0.0
      %2361 = vmatpush1.msra.mxu0 0.0
      %2362 = vmatprep.mubr.f32.mxu0 0.0
      %2363 = vmatmul.mubr.f32.gmra.mrb[0].mxu0 %v2287
      %v2364 = vpop.f32.mrb[0].mxu0
      %v2365 = vadd.f32 %v2284, %v2364
      %v2366 = vpop.f32.mrb[0].mxu0
      %2367 = vmatprep.mubr.f32.mxu0 0.0
      %2368 = vmatmul.mubr.f32.gmra.mrb[0].mxu0 %v2290
      %v2369 = vpop.f32.mrb[0].mxu0
      %v2370 = vadd.f32 %v2284, %v2369
      %v2371 = vpop.f32.mrb[0].mxu0
      %2372 = vmatprep.mubr.f32.mxu0 0.0
      %2373 = vmatmul.mubr.f32.gmra.mrb[0].mxu0 %v2293
      %v2374 = vpop.f32.mrb[0].mxu0
      %v2375 = vadd.f32 %v2284, %v2374
      %v2376 = vpop.f32.mrb[0].mxu0
      %2377 = vmatprep.mubr.f32.mxu0 0.0
      %2378 = vmatmul.mubr.f32.gmra.mrb[0].mxu0 %v2296
      %v2379 = vpop.f32.mrb[0].mxu0
      %v2380 = vadd.f32 %v2284, %v2379
      %v2381 = vpop.f32.mrb[0].mxu0
      %2382 = vdwg.mxu0
      %v2383 = vsub.f32 0.0, %v2365
      %v2384 = vsub.f32 0.0, %v2370
      %v2385 = vsub.f32 0.0, %v2375
      %v2386 = vsub.f32 0.0, %v2380
      %v2387 = vmul.f32 %v2383, 1.442695
      %v2388 = vpow.pop %v2387
      %v2389 = vmul.f32 %v2384, 1.442695
      %v2390 = vpow.pop %v2389
      %v2391 = vmul.f32 %v2385, 1.442695
      %v2392 = vpow.pop %v2391
      %v2393 = vmul.f32 %v2386, 1.442695
      %v2394 = vpow.pop %v2393
      %v2395 = vadd.f32 %v2388, 1.0
      %v2396 = vadd.f32 %v2390, 1.0
      %v2397 = vadd.f32 %v2392, 1.0
      %v2398 = vadd.f32 %v2394, 1.0
      %v2399 = vrcp.pop %v2395
      %v2400 = vmul.f32 1.0, %v2399
      %v2401 = vrcp.pop %v2396
      %v2402 = vmul.f32 1.0, %v2401
      %v2403 = vrcp.pop %v2397
      %v2404 = vmul.f32 1.0, %v2403
      %v2405 = vrcp.pop %v2398
      %v2406 = vmul.f32 1.0, %v2405
      %2411 = vrot.lane.b32.xlu0 %v2365, 32
      %v2412 = vpop.permute.xlu0 %2411
      %2413 = vrot.lane.b32.xlu0 %v2370, 32
      %v2414 = vpop.permute.xlu0 %2413
      %2415 = vrot.lane.b32.xlu0 %v2375, 32
      %v2416 = vpop.permute.xlu0 %2415
      %2417 = vrot.lane.b32.xlu0 %v2380, 32
      %v2418 = vpop.permute.xlu0 %2417
      %v2423 = vmul.f32 %v2400, %v2412
      %v2424 = vmul.f32 %v2402, %v2414
      %v2425 = vmul.f32 %v2404, %v2416
      %v2426 = vmul.f32 %v2406, %v2418
      %2431 = vrot.lane.b32.xlu0 %v2423, 64
      %v2432 = vpop.permute.xlu0 %2431
      %2433 = vrot.lane.b32.xlu0 %v2424, 64
      %v2434 = vpop.permute.xlu0 %2433
      %2435 = vrot.lane.b32.xlu0 %v2425, 64
      %v2436 = vpop.permute.xlu0 %2435
      %2437 = vrot.lane.b32.xlu0 %v2426, 64
      %v2438 = vpop.permute.xlu0 %2437
      %v2443 = vadd.f32 %v2365, %v2432
      %v2444 = vadd.f32 %v2370, %v2434
      %v2445 = vadd.f32 %v2375, %v2436
      %v2446 = vadd.f32 %v2380, %v2438
      %v2447 = vtanh.pop %v2443
      %v2448 = vtanh.pop %v2444
      %v2449 = vtanh.pop %v2445
      %v2450 = vtanh.pop %v2446
      %v2451 = vsub.f32 1.0, %v2400
      %v2452 = vsub.f32 1.0, %v2402
      %v2453 = vsub.f32 1.0, %v2404
      %v2454 = vsub.f32 1.0, %v2406
      %2459 = vrot.lane.b32.xlu0 %v2447, 96
      %v2460 = vpop.permute.xlu0 %2459
      %2461 = vrot.lane.b32.xlu0 %v2448, 96
      %v2462 = vpop.permute.xlu0 %2461
      %2463 = vrot.lane.b32.xlu0 %v2449, 96
      %v2464 = vpop.permute.xlu0 %2463
      %2465 = vrot.lane.b32.xlu0 %v2450, 96
      %v2466 = vpop.permute.xlu0 %2465
      %v2471 = vmul.f32 %v2451, %v2460
      %v2472 = vmul.f32 %v2452, %v2462
      %v2473 = vmul.f32 %v2453, %v2464
      %v2474 = vmul.f32 %v2454, %v2466
      %v2475 = vmul.f32 %v2400, %v2251
      %v2476 = vmul.f32 %v2402, %v2253
      %v2477 = vmul.f32 %v2404, %v2255
      %v2478 = vmul.f32 %v2406, %v2257
      %v2479 = vadd.f32 %v2471, %v2475
      %v2480 = vadd.f32 %v2472, %v2476
      %v2481 = vadd.f32 %v2473, %v2477
      %v2482 = vadd.f32 %v2474, %v2478
      %2487 = vrot.lane.b32.xlu0 %v2479, 96
      %v2488 = vpop.permute.xlu0 %2487
      %2489 = vrot.lane.b32.xlu0 %v2480, 96
      %v2490 = vpop.permute.xlu0 %2489
      %2491 = vrot.lane.b32.xlu0 %v2481, 96
      %v2492 = vpop.permute.xlu0 %2491
      %2493 = vrot.lane.b32.xlu0 %v2482, 96
      %v2494 = vpop.permute.xlu0 %2493
      %2499 = vst.msk [vmem:[%s690] sm:$0xff] %vm864, %v2488
      %2500 = vst.msk [vmem:[%s690 + $0x8] sm:$0xff] %vm864, %v2490
      %2501 = vst.msk [vmem:[%s690 + $0x10] sm:$0xff] %vm864, %v2492
      %2502 = vst.msk [vmem:[%s690 + $0x18] sm:$0xff] %vm864, %v2494
      %vm2503 = vcmp.gt.f32.partialorder %v2479, 0.0
      %vm2504 = vcmp.gt.f32.partialorder %v2480, 0.0
      %vm2505 = vcmp.gt.f32.partialorder %v2481, 0.0
      %vm2506 = vcmp.gt.f32.partialorder %v2482, 0.0
      %v2507 = vmin.f32 %v2479, 0.0
      %v2508 = vmin.f32 %v2480, 0.0
      %v2509 = vmin.f32 %v2481, 0.0
      %v2510 = vmin.f32 %v2482, 0.0
      %v2511 = vmul.f32 %v2507, 1.442695
      %v2512 = vpow.pop %v2511
      %v2513 = vmul.f32 %v2508, 1.442695
      %v2514 = vpow.pop %v2513
      %v2515 = vmul.f32 %v2509, 1.442695
      %v2516 = vpow.pop %v2515
      %v2517 = vmul.f32 %v2510, 1.442695
      %v2518 = vpow.pop %v2517
      %v2519 = vsub.f32 %v2512, 1.0
      %v2520 = vsub.f32 %v2514, 1.0
      %v2521 = vsub.f32 %v2516, 1.0
      %v2522 = vsub.f32 %v2518, 1.0
      %v2523 = vsel %vm2503, %v2479, %v2519
      %v2524 = vsel %vm2504, %v2480, %v2520
      %v2525 = vsel %vm2505, %v2481, %v2521
      %v2526 = vsel %vm2506, %v2482, %v2522
      %2531 = vrot.lane.b32.xlu0 %v2523, 96
      %v2532 = vpop.permute.xlu0 %2531
      %2533 = vrot.lane.b32.xlu0 %v2524, 96
      %v2534 = vpop.permute.xlu0 %2533
      %2535 = vrot.lane.b32.xlu0 %v2525, 96
      %v2536 = vpop.permute.xlu0 %2535
      %2537 = vrot.lane.b32.xlu0 %v2526, 96
      %v2538 = vpop.permute.xlu0 %2537
      %2543 = vst.msk [vmem:[%s684] sm:$0xff] %vm864, %v2532
      %2544 = vst.msk [vmem:[%s684 + $0x8] sm:$0xff] %vm864, %v2534
      %2545 = vst.msk [vmem:[%s684 + $0x10] sm:$0xff] %vm864, %v2536
      %2546 = vst.msk [vmem:[%s684 + $0x18] sm:$0xff] %vm864, %v2538
      %s2547 = smul.u32 4, %s31
      %p2548 = scmp.lt.s32.totalorder %s2547, 7
      %s2549 = scalar_select %p2548, %s2547, 7
      %s2550 = smul.addr %s2549, 8
      %s2551 = scalar_lea.vmem %s16, %s2550
      %s2552 = smul.u32 4, %s31
      %p2553 = scmp.lt.s32.totalorder %s2552, 7
      %s2554 = scalar_select %p2553, %s2552, 7
      %s2555 = smul.addr %s2554, 8
      %s2556 = scalar_lea.vmem %s17, %s2555
      // Predicated region
      $region85: #{tpu_custom_call.1} parent=83 // pred_check
        %p2557 = pneg %p420
      $region86: #{tpu_custom_call.1} parent=83 // pred_check_branch
        %2559 = sbr.rel (%p2557) target = $region88
      $region87: #{tpu_custom_call.1} parent=83 // pred_region
        %s2560 = smul.u32 4, %s31
      $region88: #{tpu_custom_call.1} parent=83 // pred_fallthru
        _
      // Predicated region
      $region89: #{tpu_custom_call.1} parent=83 // pred_check
        %p2561 = pneg %p446
      $region90: #{tpu_custom_call.1} parent=83 // pred_check_branch
        %2563 = sbr.rel (%p2561) target = $region92
      $region91: #{tpu_custom_call.1} parent=83 // pred_region
        %s2564 = smul.u32 4, %s31
      $region92: #{tpu_custom_call.1} parent=83 // pred_fallthru
        _
    $region84: #{tpu_custom_call.1} parent=5 // pred_fallthru
      _
    %p2565 = scmp.le.s32.totalorder 2, %s26
    // Predicated region
    $region93: #{tpu_custom_call.1} parent=5 // pred_check
      %p2566 = pneg %p2565
    $region94: #{tpu_custom_call.1} parent=5 // pred_check_branch
      %2568 = sbr.rel (%p2566) target = $region96
    $region95: #{tpu_custom_call.1} parent=5 // pred_region
      %s2569 = ssub.s32 %s26, 2
      // Predicated region
      $region97: #{tpu_custom_call.1} parent=95 // pred_check
        %p2570 = pneg %p426
      $region98: #{tpu_custom_call.1} parent=95 // pred_check_branch
        %2572 = sbr.rel (%p2570) target = $region100
      $region99: #{tpu_custom_call.1} parent=95 // pred_region
        %s2573 = smul.u32 4, %s32
        %p2574 = scmp.lt.s32.totalorder %s2573, 7
        %s2575 = scalar_select %p2574, %s2573, 7
        %s2576 = smul.addr %s2575, 8
        %s2577 = scalar_lea.vmem %s16, %s2576
      $region100: #{tpu_custom_call.1} parent=95 // pred_fallthru
        _
      // Predicated region
      $region101: #{tpu_custom_call.1} parent=95 // pred_check
        %p2578 = pneg %p452
      $region102: #{tpu_custom_call.1} parent=95 // pred_check_branch
        %2580 = sbr.rel (%p2578) target = $region104
      $region103: #{tpu_custom_call.1} parent=95 // pred_region
        %s2581 = smul.u32 4, %s32
        %p2582 = scmp.lt.s32.totalorder %s2581, 7
        %s2583 = scalar_select %p2582, %s2581, 7
        %s2584 = smul.addr %s2583, 8
        %s2585 = scalar_lea.vmem %s17, %s2584
      $region104: #{tpu_custom_call.1} parent=95 // pred_fallthru
        _
    $region96: #{tpu_custom_call.1} parent=5 // pred_fallthru
      _
  $region6: #{tpu_custom_call.1} parent=0 // loop_footer
    %s30 = sadd.s32 1, %s26
  $region7: #{tpu_custom_call.1} parent=0 // loop_footer_branch
    %25 = sbr.rel target = $region3
  $region8: #{tpu_custom_call.1} parent=0 // loop_exit
    _

</llo_original>
